<compile_context>
chip_gen: v7x
topology: tpu7x:2x2x1
jax: 0.10.0
libtpu: 0.0.40
codegen_flags: <defaults>
</compile_context>

<pallas_src>
import functools

import jax
import jax.numpy as jnp
import numpy as np
from jax.experimental import pallas as pl
from jax.experimental.pallas import tpu as pltpu

EPS = 1e-5
LANE = 128
MAX_TILE_M = 4096
MIN_TILE_M = 256
K_TILE_TARGET = 1152      # multiple of 128; keeps weight blocks small on v7x
K_SINGLE_MAX = 2048       # below this, keep the whole contraction resident


def _round_up(x, m):
    return (x + m - 1) // m * m


def _cdiv(a, b):
    return -(-a // b)


def _vmem_limit_bytes():
    """Per-generation scoped-VMEM limit (v5e/v6e: 128 MiB phys, v7x: 64 MiB)."""
    try:
        cap = int(pltpu.get_tpu_info().vmem_capacity_bytes)
    except Exception:
        cap = 64 * 1024 * 1024
    return int(max(32 * 1024 * 1024, min(cap * 3 // 4, 96 * 1024 * 1024)))


VMEM_LIMIT = _vmem_limit_bytes()
BLOCK_BUDGET = max(16 * 1024 * 1024, VMEM_LIMIT // 2)   # budget for block sizing


def _choose_k_tiling(k):
    if k <= K_SINGLE_MAX:
        return k, k, 1
    grid_k = _cdiv(k, K_TILE_TARGET)
    tk = _round_up(_cdiv(k, grid_k), 128)     # LHS block last dim must be 128-aligned
    return tk, tk * grid_k, grid_k


def _choose_m_tiling(m, tk, coutp, budget=None):
    """Adaptive M tile: biggest tile that fits the VMEM budget for this K/Cout."""
    budget = BLOCK_BUDGET if budget is None else budget
    # lhs (2 bufs bf16) + weight (2 bufs bf16) + out (2 bufs bf16)
    # + f32 accumulator scratch + f32 temporaries of the stats epilogue.
    per_row = 4 * tk + 16 * coutp
    fixed = 4 * tk * coutp
    t = max(MIN_TILE_M, (budget - fixed) // per_row)
    t = min(t, MAX_TILE_M, _round_up(m, 16))
    if m >= 2 * MIN_TILE_M:                   # keep >=2 M-tiles for v7x's 2 TCs
        t = min(t, _round_up(_cdiv(m, 2), 16))
    t = _round_up(t, 16)
    grid_m = _cdiv(m, t)
    return t, t * grid_m, grid_m


# ---------------------------------------------------------------------------
# Pallas kernels
# ---------------------------------------------------------------------------
def _conv_stats_kernel(lhs_ref, w_ref, out_ref, stats_ref, acc_ref):
    """One M-tile of conv-as-matmul with K accumulation.

    At the last K step, store the tile in bf16 and emit shifted per-tile BN
    statistics: row0 = sum(x - c), row1 = sum((x - c)^2), row2 = c, where
    c = first row of the tile (a real sample -> no catastrophic cancellation).
    """
    kk = pl.program_id(1)

    @pl.when(kk == 0)
    def _():
        acc_ref[...] = jnp.zeros_like(acc_ref)

    acc_ref[...] += jnp.dot(lhs_ref[...], w_ref[...],
                            preferred_element_type=jnp.float32)

    @pl.when(kk == pl.num_programs(1) - 1)
    def _():
        acc = acc_ref[...]
        out_ref[...] = acc.astype(out_ref.dtype)
        c = acc[0:1, :]
        d = acc - c
        stats_ref[:, 0:1, :] = jnp.sum(d, axis=0, keepdims=True).reshape(1, 1, -1)
        stats_ref[:, 1:2, :] = jnp.sum(d * d, axis=0, keepdims=True).reshape(1, 1, -1)
        stats_ref[:, 2:3, :] = c.reshape(1, 1, -1)


def _bn_add_relu_proj_kernel(x_ref, r_ref, sx_ref, tx_ref, sr_ref, tr_ref,
                             out_ref):
    """Fused BN2 + shortcut-BN + residual add + ReLU (projection shortcut)."""
    y = (x_ref[...].astype(jnp.float32) * sx_ref[...] + tx_ref[...]
         + r_ref[...].astype(jnp.float32) * sr_ref[...] + tr_ref[...])
    out_ref[...] = jnp.maximum(y, 0.0).astype(out_ref.dtype)


def _bn_add_relu_id_kernel(x_ref, r_ref, sx_ref, tx_ref, out_ref):
    """Fused BN2 + identity residual add + ReLU (no shortcut scale/shift work)."""
    y = (x_ref[...].astype(jnp.float32) * sx_ref[...] + tx_ref[...]
         + r_ref[...].astype(jnp.float32))
    out_ref[...] = jnp.maximum(y, 0.0).astype(out_ref.dtype)


# ---------------------------------------------------------------------------
# pallas_call wrappers
# ---------------------------------------------------------------------------
def conv_matmul_stats(lhs, w, *, compute_dtype=jnp.bfloat16,
                      tile_m=None, m_pad=None):
    """lhs (M, K) @ w (K, Coutp) on the MXU.

    Returns (bf16 conv output (m_pad, Coutp), shifted per-tile stats
    (grid_m, 3, Coutp) in f32, tile_m, m_pad)."""
    m, k = lhs.shape
    coutp = w.shape[1]
    tk, k_pad, grid_k = _choose_k_tiling(k)
    if tile_m is None:
        tile_m, m_pad, grid_m = _choose_m_tiling(m, tk, coutp)
    else:
        grid_m = m_pad // tile_m
    if m_pad != m or k_pad != k:
        lhs = jnp.pad(lhs, ((0, m_pad - m), (0, k_pad - k)))
    if k_pad != k:
        w = jnp.pad(w, ((0, k_pad - k), (0, 0)))

    cost = pl.CostEstimate(
        flops=2 * m_pad * k_pad * coutp, transcendentals=0,
        bytes_accessed=(m_pad * k_pad * 2 + k_pad * coutp * 2
                        + m_pad * coutp * 2 + grid_m * 3 * coutp * 4))
    conv, stats = pl.pallas_call(
        _conv_stats_kernel,
        out_shape=(jax.ShapeDtypeStruct((m_pad, coutp), compute_dtype),
                   jax.ShapeDtypeStruct((grid_m, 3, coutp), jnp.float32)),
        grid=(grid_m, grid_k),
        in_specs=[pl.BlockSpec((tile_m, tk), lambda i, kk: (i, kk)),
                  pl.BlockSpec((tk, coutp), lambda i, kk: (kk, 0))],
        out_specs=(pl.BlockSpec((tile_m, coutp), lambda i, kk: (i, 0)),
                   pl.BlockSpec((1, 3, coutp), lambda i, kk: (i, 0, 0))),
        scratch_shapes=[pltpu.VMEM((tile_m, coutp), jnp.float32)],
        compiler_params=pltpu.CompilerParams(
            dimension_semantics=("parallel", "arbitrary"),
            vmem_limit_bytes=VMEM_LIMIT),
        cost_estimate=cost,
    )(lhs.astype(compute_dtype), w.astype(compute_dtype))
    return conv, stats, tile_m, m_pad


def bn_add_relu(x, res, scale_x, shift_x, scale_r, shift_r, *, tile_m,
                out_dtype=jnp.float32):
    """Fused BN2 (+ shortcut BN) + residual add + ReLU over (m_pad, Coutp)."""
    m_pad, coutp = x.shape
    grid_m = m_pad // tile_m
    full = pl.BlockSpec((tile_m, coutp), lambda i: (i, 0))
    vec = pl.BlockSpec((1, coutp), lambda i: (0, 0))
    if scale_r is None:                                    # identity shortcut
        kernel, ins = _bn_add_relu_id_kernel, (x, res, scale_x, shift_x)
        in_specs = [full, full, vec, vec]
        flops = 3 * m_pad * coutp
    else:                                                  # projection shortcut
        kernel, ins = _bn_add_relu_proj_kernel, (x, res, scale_x, shift_x,
                                                 scale_r, shift_r)
        in_specs = [full, full, vec, vec, vec, vec]
        flops = 5 * m_pad * coutp
    cost = pl.CostEstimate(
        flops=flops, transcendentals=0,
        bytes_accessed=m_pad * coutp * (2 + 2 + jnp.dtype(out_dtype).itemsize))
    return pl.pallas_call(
        kernel,
        out_shape=jax.ShapeDtypeStruct((m_pad, coutp), out_dtype),
        grid=(grid_m,),
        in_specs=in_specs,
        out_specs=full,
        compiler_params=pltpu.CompilerParams(
            dimension_semantics=("parallel",),
            vmem_limit_bytes=VMEM_LIMIT),
        cost_estimate=cost,
    )(*ins)


# ---------------------------------------------------------------------------
# Glue (plain JAX): im2col with taps folded into the contraction axis
# ---------------------------------------------------------------------------
def _im2col_3x3(x_nhwc, stride, dtype):
    """NHWC -> (N*Ho*Wo, 9*C); padding=1, 3x3 kernel, taps folded into K."""
    # TODO(synk): replace this HBM-materialized im2col with an in-kernel
    # halo-slab DMA (memory_space=pl.ANY + make_async_copy) to cut activation
    # HBM traffic ~9x on the wide early layers.
    n, h, w, c = x_nhwc.shape
    xp = jnp.pad(x_nhwc, ((0, 0), (1, 1), (1, 1), (0, 0)))
    ho = (h - 1) // stride + 1
    wo = (w - 1) // stride + 1
    cols = []
    for dh in range(3):
        for dw in range(3):
            cols.append(xp[:, dh:dh + stride * (ho - 1) + 1:stride,
                           dw:dw + stride * (wo - 1) + 1:stride, :])
    lhs = jnp.concatenate(cols, axis=-1).reshape(n * ho * wo, 9 * c)
    return lhs.astype(dtype), ho, wo


def _prep_weight(w_taps, coutp, dtype):
    k = w_taps.shape[0] * w_taps.shape[1]
    cout = w_taps.shape[2]
    w = w_taps.reshape(k, cout)
    if coutp != cout:
        w = jnp.pad(w, ((0, 0), (0, coutp - cout)))
    return w.astype(dtype)


def _pad_channels(v, coutp):
    return jnp.pad(v, (0, coutp - v.shape[0])) if v.shape[0] != coutp else v


def _bn_scale_shift(stats, m, tile_m, gamma_p, beta_p):
    """Chan-style combine of shifted per-tile sums -> per-channel scale/shift."""
    grid_m = stats.shape[0]
    s = stats[:, 0, :]            # sum(x - c) over the (zero-row-padded) tile
    q = stats[:, 1, :]            # sum((x - c)^2)
    c = stats[:, 2, :]            # per-tile shift (first row of the tile)
    counts_np = np.full((grid_m, 1), float(tile_m), np.float32)
    counts_np[-1, 0] = float(m - (grid_m - 1) * tile_m)
    counts = jnp.asarray(counts_np)
    pads = jnp.asarray(float(tile_m) - counts_np)      # zero pad-rows per tile
    s = s + pads * c              # remove pad rows' (0 - c) contributions
    q = q - pads * c * c
    mean_t = c + s / counts
    m2_t = jnp.maximum(q - s * s / counts, 0.0)
    mean = jnp.sum(counts * mean_t, axis=0) / m
    m2 = jnp.sum(m2_t, axis=0) + jnp.sum(counts * (mean_t - mean) ** 2, axis=0)
    var = m2 / m
    scale = gamma_p * jax.lax.rsqrt(var + EPS)
    shift = beta_p - mean * scale
    return (scale.reshape(1, -1).astype(jnp.float32),
            shift.reshape(1, -1).astype(jnp.float32))


# ---------------------------------------------------------------------------
# BasicBlock forward
# ---------------------------------------------------------------------------
def init_basic_block_params(key, in_planes, planes, stride):
    k1, k2, k3 = jax.random.split(key, 3)
    params = {
        "w1": jax.random.normal(k1, (9, in_planes, planes), jnp.float32) * 0.1,
        "g1": jnp.ones((planes,), jnp.float32),
        "b1": jnp.zeros((planes,), jnp.float32),
        "w2": jax.random.normal(k2, (9, planes, planes), jnp.float32) * 0.1,
        "g2": jnp.ones((planes,), jnp.float32),
        "b2": jnp.zeros((planes,), jnp.float32),
    }
    if stride != 1 or in_planes != planes:
        params["wsc"] = jax.random.normal(
            k3, (1, in_planes, planes), jnp.float32) * 0.1
        params["gsc"] = jnp.ones((planes,), jnp.float32)
        params["bsc"] = jnp.zeros((planes,), jnp.float32)
    return params


def basic_block_forward_nhwc(x_nhwc, params, in_planes, planes, stride,
                             compute_dtype=jnp.bfloat16):
    """NHWC in / NHWC out so chained blocks can skip layout transposes."""
    n = x_nhwc.shape[0]
    x = x_nhwc.astype(jnp.float32)
    coutp = _round_up(planes, LANE)           # lane-dense output channels

    g1 = _pad_channels(params["g1"], coutp); b1 = _pad_channels(params["b1"], coutp)
    g2 = _pad_channels(params["g2"], coutp); b2 = _pad_channels(params["b2"], coutp)

    # ---- conv1 (3x3, stride) + exact batch-norm statistics ----
    lhs1, ho, wo = _im2col_3x3(x, stride, compute_dtype)
    m = n * ho * wo
    conv1, st1, tm1, _ = conv_matmul_stats(
        lhs1, _prep_weight(params["w1"], coutp, compute_dtype),
        compute_dtype=compute_dtype)
    scale1, shift1 = _bn_scale_shift(st1, m, tm1, g1, b1)

    # ---- BN1 + ReLU folded (by XLA) into conv2's im2col build: the bn'ed
    #      intermediate never takes a standalone HBM round trip ----
    out1 = jnp.maximum(conv1[:m, :planes].astype(jnp.float32)
                       * scale1[:, :planes] + shift1[:, :planes], 0.0)
    out1_nhwc = out1.astype(compute_dtype).reshape(n, ho, wo, planes)

    # ---- conv2 (3x3, stride 1) + stats ----
    lhs2, _, _ = _im2col_3x3(out1_nhwc, 1, compute_dtype)
    conv2, st2, tm2, mp2 = conv_matmul_stats(
        lhs2, _prep_weight(params["w2"], coutp, compute_dtype),
        compute_dtype=compute_dtype)
    scale2, shift2 = _bn_scale_shift(st2, m, tm2, g2, b2)

    # ---- shortcut + fused epilogue (BN2 [+ shortcut BN] + add + ReLU) ----
    if stride != 1 or in_planes != planes:
        lhs_sc = x[:, ::stride, ::stride, :].reshape(m, in_planes)
        sc, stsc, _, _ = conv_matmul_stats(
            lhs_sc.astype(compute_dtype),
            _prep_weight(params["wsc"], coutp, compute_dtype),
            compute_dtype=compute_dtype, tile_m=tm2, m_pad=mp2)
        scale_sc, shift_sc = _bn_scale_shift(
            stsc, m, tm2, _pad_channels(params["gsc"], coutp),
            _pad_channels(params["bsc"], coutp))
        y = bn_add_relu(conv2, sc, scale2, shift2, scale_sc, shift_sc,
                        tile_m=tm2)
    else:
        res = jnp.pad(x.reshape(m, in_planes),
                      ((0, mp2 - m), (0, coutp - in_planes))).astype(compute_dtype)
        y = bn_add_relu(conv2, res, scale2, shift2, None, None, tile_m=tm2)

    return y[:m, :planes].reshape(n, ho, wo, planes)


def basic_block_forward(x_nchw, params, in_planes, planes, stride,
                        compute_dtype=jnp.bfloat16):
    x = jnp.transpose(x_nchw, (0, 2, 3, 1))       # NCHW -> NHWC
    y = basic_block_forward_nhwc(x, params, in_planes, planes, stride,
                                 compute_dtype)
    return jnp.transpose(y, (0, 3, 1, 2))          # back to NCHW


# ---------------------------------------------------------------------------
# Pure-JAX reference (mirrors the kernel's bf16-input / f32-accumulate numerics)
# ---------------------------------------------------------------------------
def _ref_conv(x_nchw, w_taps, stride, ksize, compute_dtype):
    _, cin, cout = w_taps.shape
    w = jnp.transpose(w_taps.reshape(ksize, ksize, cin, cout), (3, 2, 0, 1))
    pad = 1 if ksize == 3 else 0
    return jax.lax.conv_general_dilated(
        x_nchw.astype(compute_dtype), w.astype(compute_dtype),
        window_strides=(stride, stride), padding=[(pad, pad), (pad, pad)],
        dimension_numbers=("NCHW", "OIHW", "NCHW"),
        preferred_element_type=jnp.float32)


def _ref_bn(x_f32, gamma, beta, apply_dtype):
    # Stats from the f32 conv output; scale/shift applied to the bf16-quantized
    # values (exactly what the Pallas path does: stats from the f32 accumulator,
    # apply on the bf16-stored conv output).
    mean = jnp.mean(x_f32, axis=(0, 2, 3), keepdims=True)
    var = jnp.mean((x_f32 - mean) ** 2, axis=(0, 2, 3), keepdims=True)
    scale = gamma.reshape(1, -1, 1, 1) * jax.lax.rsqrt(var + EPS)
    shift = beta.reshape(1, -1, 1, 1) - mean * scale
    xq = x_f32.astype(apply_dtype).astype(jnp.float32)
    return xq * scale + shift


def ref_forward(x_nchw, params, in_planes, planes, stride,
                compute_dtype=jnp.bfloat16):
    out = jax.nn.relu(_ref_bn(_ref_conv(x_nchw, params["w1"], stride, 3,
                                        compute_dtype),
                              params["g1"], params["b1"], compute_dtype))
    out = _ref_bn(_ref_conv(out, params["w2"], 1, 3, compute_dtype),
                  params["g2"], params["b2"], compute_dtype)
    if stride != 1 or in_planes != planes:
        sc = _ref_bn(_ref_conv(x_nchw, params["wsc"], stride, 1, compute_dtype),
                     params["gsc"], params["bsc"], compute_dtype)
    else:
        sc = x_nchw.astype(compute_dtype).astype(jnp.float32)
    return jax.nn.relu(out + sc)


# ---------------------------------------------------------------------------
if __name__ == "__main__":
    key = jax.random.PRNGKey(0)
    configs = [
        # (N, in_planes, planes, H, W, stride)
        (2, 4, 8, 16, 16, 2),    # projection shortcut (stride 2)
        (2, 8, 8, 8, 8, 1),      # identity shortcut
        (2, 256, 128, 8, 8, 1),  # channel-changing projection; exercises K-tiling
    ]
    for idx, (n, cin, cout, h, w, stride) in enumerate(configs):
        kx, kp = jax.random.split(jax.random.fold_in(key, idx))
        x = jax.random.normal(kx, (n, cin, h, w), jnp.float32)
        params = init_basic_block_params(kp, cin, cout, stride)

        fwd = jax.jit(functools.partial(basic_block_forward,
                                        in_planes=cin, planes=cout,
                                        stride=stride))
        out = jax.block_until_ready(fwd(x, params))

        ho = (h - 1) // stride + 1
        wo = (w - 1) // stride + 1
        assert out.shape == (n, cout, ho, wo), out.shape

        ref = jax.block_until_ready(ref_forward(x, params, cin, cout, stride))
        np.testing.assert_allclose(np.asarray(out), np.asarray(ref),
                                   rtol=1e-2, atol=1e-2)

    print("KERNEL_OK")
</pallas_src>

<mosaic_0001>
module attributes {stable_mosaic.version = 11 : i64} {
  func.func @_conv_stats_kernel(%arg0: i32, %arg1: i32, %arg2: memref<128x4xbf16, #tpu.memory_space<vmem>>, %arg3: memref<4x128xbf16, #tpu.memory_space<vmem>>, %arg4: memref<128x128xbf16, #tpu.memory_space<vmem>>, %arg5: memref<1x3x128xf32, #tpu.memory_space<vmem>>, %arg6: memref<128x128xf32, #tpu.memory_space<vmem>>) attributes {dimension_semantics = [#tpu.dimension_semantics<parallel>, #tpu.dimension_semantics<arbitrary>], iteration_bounds = array<i64: 1, 1>, scalar_prefetch = 0 : i64, scratch_operands = 1 : i64, tpu.core_type = #tpu.core_type<tc>, window_params = [{transform_indices = @transform_0, window_bounds = array<i64: 128, 4>}, {transform_indices = @transform_1, window_bounds = array<i64: 4, 128>}, {transform_indices = @transform_2, window_bounds = array<i64: 128, 128>}, {transform_indices = @transform_3, window_bounds = array<i64: 1, 3, 128>}]} {
    %c0_i32 = arith.constant 0 : i32
    %0 = arith.cmpi eq, %arg1, %c0_i32 : i32
    %1 = arith.extui %0 : i1 to i32
    %c0_i32_0 = arith.constant 0 : i32
    %2 = arith.cmpi ne, %1, %c0_i32_0 : i32
    scf.if %2 {
      %cst_10 = arith.constant 0.000000e+00 : f32
      %12 = vector.broadcast %cst_10 : f32 to vector<128x128xf32>
      %c0_11 = arith.constant 0 : index
      %c0_12 = arith.constant 0 : index
      %13 = vector.load %arg6[%c0_11, %c0_12] : memref<128x128xf32, #tpu.memory_space<vmem>>, vector<128x128xf32>
      tpu.vector_store %arg6[%c0_11, %c0_12], %12 {strides = array<i32>} : memref<128x128xf32, #tpu.memory_space<vmem>>, vector<128x128xf32>,
    } else {
    }
    %c0 = arith.constant 0 : index
    %c0_1 = arith.constant 0 : index
    %3 = vector.load %arg6[%c0, %c0_1] : memref<128x128xf32, #tpu.memory_space<vmem>>, vector<128x128xf32>
    %c0_2 = arith.constant 0 : index
    %c0_3 = arith.constant 0 : index
    %4 = vector.load %arg2[%c0_2, %c0_3] : memref<128x4xbf16, #tpu.memory_space<vmem>>, vector<128x4xbf16>
    %c0_4 = arith.constant 0 : index
    %c0_5 = arith.constant 0 : index
    %5 = vector.load %arg3[%c0_4, %c0_5] : memref<4x128xbf16, #tpu.memory_space<vmem>>, vector<4x128xbf16>
    %cst = arith.constant dense<0.000000e+00> : vector<128x128xf32>
    %6 = tpu.matmul %4, %5, %cst {dimension_numbers = #tpu.dot_dimension_numbers<[1], [0], [0], [1], [0, 0, 1, 1], [], []>} : vector<128x4xbf16>, vector<4x128xbf16>, vector<128x128xf32> -> vector<128x128xf32>
    %7 = arith.addf %3, %6 : vector<128x128xf32>
    %c0_6 = arith.constant 0 : index
    %c0_7 = arith.constant 0 : index
    %8 = vector.load %arg6[%c0_6, %c0_7] : memref<128x128xf32, #tpu.memory_space<vmem>>, vector<128x128xf32>
    tpu.vector_store %arg6[%c0_6, %c0_7], %7 {strides = array<i32>} : memref<128x128xf32, #tpu.memory_space<vmem>>, vector<128x128xf32>,
    %c0_i32_8 = arith.constant 0 : i32
    %9 = arith.cmpi eq, %arg1, %c0_i32_8 : i32
    %10 = arith.extui %9 : i1 to i32
    %c0_i32_9 = arith.constant 0 : i32
    %11 = arith.cmpi ne, %10, %c0_i32_9 : i32
    scf.if %11 {
      %c0_10 = arith.constant 0 : index
      %c0_11 = arith.constant 0 : index
      %12 = vector.load %arg6[%c0_10, %c0_11] : memref<128x128xf32, #tpu.memory_space<vmem>>, vector<128x128xf32>
      %13 = arith.truncf %12 : vector<128x128xf32> to vector<128x128xbf16>
      %c0_12 = arith.constant 0 : index
      %c0_13 = arith.constant 0 : index
      %14 = vector.load %arg4[%c0_12, %c0_13] : memref<128x128xbf16, #tpu.memory_space<vmem>>, vector<128x128xbf16>
      tpu.vector_store %arg4[%c0_12, %c0_13], %13 {strides = array<i32>} : memref<128x128xbf16, #tpu.memory_space<vmem>>, vector<128x128xbf16>,
      %15 = vector.extract_strided_slice %12 {offsets = [0, 0], sizes = [1, 128], strides = [1, 1]} : vector<128x128xf32> to vector<1x128xf32>
      %16 = vector.broadcast %15 : vector<1x128xf32> to vector<128x128xf32>
      %17 = arith.subf %12, %16 : vector<128x128xf32>
      %cst_14 = arith.constant dense<0.000000e+00> : vector<128xf32>
      %18 = vector.multi_reduction <add>, %17, %cst_14 [0] : vector<128x128xf32> to vector<128xf32>
      %19 = vector.shape_cast %18 : vector<128xf32> to vector<1x128xf32>
      %20 = vector.shape_cast %19 : vector<1x128xf32> to vector<1x1x128xf32>
      %c0_15 = arith.constant 0 : index
      %c0_16 = arith.constant 0 : index
      %c0_17 = arith.constant 0 : index
      %21 = vector.load %arg5[%c0_15, %c0_16, %c0_17] : memref<1x3x128xf32, #tpu.memory_space<vmem>>, vector<1x1x128xf32>
      tpu.vector_store %arg5[%c0_15, %c0_16, %c0_17], %20 {strides = array<i32>} : memref<1x3x128xf32, #tpu.memory_space<vmem>>, vector<1x1x128xf32>,
      %22 = arith.mulf %17, %17 : vector<128x128xf32>
      %cst_18 = arith.constant dense<0.000000e+00> : vector<128xf32>
      %23 = vector.multi_reduction <add>, %22, %cst_18 [0] : vector<128x128xf32> to vector<128xf32>
      %24 = vector.shape_cast %23 : vector<128xf32> to vector<1x128xf32>
      %25 = vector.shape_cast %24 : vector<1x128xf32> to vector<1x1x128xf32>
      %c0_19 = arith.constant 0 : index
      %c1 = arith.constant 1 : index
      %c0_20 = arith.constant 0 : index
      %26 = vector.load %arg5[%c0_19, %c1, %c0_20] : memref<1x3x128xf32, #tpu.memory_space<vmem>>, vector<1x1x128xf32>
      tpu.vector_store %arg5[%c0_19, %c1, %c0_20], %25 {strides = array<i32>} : memref<1x3x128xf32, #tpu.memory_space<vmem>>, vector<1x1x128xf32>,
      %27 = vector.shape_cast %15 : vector<1x128xf32> to vector<1x1x128xf32>
      %c0_21 = arith.constant 0 : index
      %c2 = arith.constant 2 : index
      %c0_22 = arith.constant 0 : index
      %28 = vector.load %arg5[%c0_21, %c2, %c0_22] : memref<1x3x128xf32, #tpu.memory_space<vmem>>, vector<1x1x128xf32>
      tpu.vector_store %arg5[%c0_21, %c2, %c0_22], %27 {strides = array<i32>} : memref<1x3x128xf32, #tpu.memory_space<vmem>>, vector<1x1x128xf32>,
    } else {
    }
    return
  }
  func.func @transform_0(%arg0: i32, %arg1: i32) -> (i32, i32) {
    %c0_i32 = arith.constant 0 : i32
    return %arg0, %arg1 : i32, i32
  }
  func.func @transform_1(%arg0: i32, %arg1: i32) -> (i32, i32) {
    %c0_i32 = arith.constant 0 : i32
    %c0_i32_0 = arith.constant 0 : i32
    return %arg1, %c0_i32 : i32, i32
  }
  func.func @transform_2(%arg0: i32, %arg1: i32) -> (i32, i32) {
    %c0_i32 = arith.constant 0 : i32
    %c0_i32_0 = arith.constant 0 : i32
    return %arg0, %c0_i32 : i32, i32
  }
  func.func @transform_3(%arg0: i32, %arg1: i32) -> (i32, i32, i32) {
    %c0_i32 = arith.constant 0 : i32
    %c0_i32_0 = arith.constant 0 : i32
    %c0_i32_1 = arith.constant 0 : i32
    return %arg0, %c0_i32, %c0_i32_0 : i32, i32, i32
  }
}

module attributes {stable_mosaic.version = 11 : i64} {
  func.func @_conv_stats_kernel(%arg0: i32, %arg1: i32, %arg2: memref<128x36xbf16, #tpu.memory_space<vmem>>, %arg3: memref<36x128xbf16, #tpu.memory_space<vmem>>, %arg4: memref<128x128xbf16, #tpu.memory_space<vmem>>, %arg5: memref<1x3x128xf32, #tpu.memory_space<vmem>>, %arg6: memref<128x128xf32, #tpu.memory_space<vmem>>) attributes {dimension_semantics = [#tpu.dimension_semantics<parallel>, #tpu.dimension_semantics<arbitrary>], iteration_bounds = array<i64: 1, 1>, scalar_prefetch = 0 : i64, scratch_operands = 1 : i64, tpu.core_type = #tpu.core_type<tc>, window_params = [{transform_indices = @transform_0, window_bounds = array<i64: 128, 36>}, {transform_indices = @transform_1, window_bounds = array<i64: 36, 128>}, {transform_indices = @transform_2, window_bounds = array<i64: 128, 128>}, {transform_indices = @transform_3, window_bounds = array<i64: 1, 3, 128>}]} {
    %c0_i32 = arith.constant 0 : i32
    %0 = arith.cmpi eq, %arg1, %c0_i32 : i32
    %1 = arith.extui %0 : i1 to i32
    %c0_i32_0 = arith.constant 0 : i32
    %2 = arith.cmpi ne, %1, %c0_i32_0 : i32
    scf.if %2 {
      %cst_10 = arith.constant 0.000000e+00 : f32
      %12 = vector.broadcast %cst_10 : f32 to vector<128x128xf32>
      %c0_11 = arith.constant 0 : index
      %c0_12 = arith.constant 0 : index
      %13 = vector.load %arg6[%c0_11, %c0_12] : memref<128x128xf32, #tpu.memory_space<vmem>>, vector<128x128xf32>
      tpu.vector_store %arg6[%c0_11, %c0_12], %12 {strides = array<i32>} : memref<128x128xf32, #tpu.memory_space<vmem>>, vector<128x128xf32>,
    } else {
    }
    %c0 = arith.constant 0 : index
    %c0_1 = arith.constant 0 : index
    %3 = vector.load %arg6[%c0, %c0_1] : memref<128x128xf32, #tpu.memory_space<vmem>>, vector<128x128xf32>
    %c0_2 = arith.constant 0 : index
    %c0_3 = arith.constant 0 : index
    %4 = vector.load %arg2[%c0_2, %c0_3] : memref<128x36xbf16, #tpu.memory_space<vmem>>, vector<128x36xbf16>
    %c0_4 = arith.constant 0 : index
    %c0_5 = arith.constant 0 : index
    %5 = vector.load %arg3[%c0_4, %c0_5] : memref<36x128xbf16, #tpu.memory_space<vmem>>, vector<36x128xbf16>
    %cst = arith.constant dense<0.000000e+00> : vector<128x128xf32>
    %6 = tpu.matmul %4, %5, %cst {dimension_numbers = #tpu.dot_dimension_numbers<[1], [0], [0], [1], [0, 0, 1, 1], [], []>} : vector<128x36xbf16>, vector<36x128xbf16>, vector<128x128xf32> -> vector<128x128xf32>
    %7 = arith.addf %3, %6 : vector<128x128xf32>
    %c0_6 = arith.constant 0 : index
    %c0_7 = arith.constant 0 : index
    %8 = vector.load %arg6[%c0_6, %c0_7] : memref<128x128xf32, #tpu.memory_space<vmem>>, vector<128x128xf32>
    tpu.vector_store %arg6[%c0_6, %c0_7], %7 {strides = array<i32>} : memref<128x128xf32, #tpu.memory_space<vmem>>, vector<128x128xf32>,
    %c0_i32_8 = arith.constant 0 : i32
    %9 = arith.cmpi eq, %arg1, %c0_i32_8 : i32
    %10 = arith.extui %9 : i1 to i32
    %c0_i32_9 = arith.constant 0 : i32
    %11 = arith.cmpi ne, %10, %c0_i32_9 : i32
    scf.if %11 {
      %c0_10 = arith.constant 0 : index
      %c0_11 = arith.constant 0 : index
      %12 = vector.load %arg6[%c0_10, %c0_11] : memref<128x128xf32, #tpu.memory_space<vmem>>, vector<128x128xf32>
      %13 = arith.truncf %12 : vector<128x128xf32> to vector<128x128xbf16>
      %c0_12 = arith.constant 0 : index
      %c0_13 = arith.constant 0 : index
      %14 = vector.load %arg4[%c0_12, %c0_13] : memref<128x128xbf16, #tpu.memory_space<vmem>>, vector<128x128xbf16>
      tpu.vector_store %arg4[%c0_12, %c0_13], %13 {strides = array<i32>} : memref<128x128xbf16, #tpu.memory_space<vmem>>, vector<128x128xbf16>,
      %15 = vector.extract_strided_slice %12 {offsets = [0, 0], sizes = [1, 128], strides = [1, 1]} : vector<128x128xf32> to vector<1x128xf32>
      %16 = vector.broadcast %15 : vector<1x128xf32> to vector<128x128xf32>
      %17 = arith.subf %12, %16 : vector<128x128xf32>
      %cst_14 = arith.constant dense<0.000000e+00> : vector<128xf32>
      %18 = vector.multi_reduction <add>, %17, %cst_14 [0] : vector<128x128xf32> to vector<128xf32>
      %19 = vector.shape_cast %18 : vector<128xf32> to vector<1x128xf32>
      %20 = vector.shape_cast %19 : vector<1x128xf32> to vector<1x1x128xf32>
      %c0_15 = arith.constant 0 : index
      %c0_16 = arith.constant 0 : index
      %c0_17 = arith.constant 0 : index
      %21 = vector.load %arg5[%c0_15, %c0_16, %c0_17] : memref<1x3x128xf32, #tpu.memory_space<vmem>>, vector<1x1x128xf32>
      tpu.vector_store %arg5[%c0_15, %c0_16, %c0_17], %20 {strides = array<i32>} : memref<1x3x128xf32, #tpu.memory_space<vmem>>, vector<1x1x128xf32>,
      %22 = arith.mulf %17, %17 : vector<128x128xf32>
      %cst_18 = arith.constant dense<0.000000e+00> : vector<128xf32>
      %23 = vector.multi_reduction <add>, %22, %cst_18 [0] : vector<128x128xf32> to vector<128xf32>
      %24 = vector.shape_cast %23 : vector<128xf32> to vector<1x128xf32>
      %25 = vector.shape_cast %24 : vector<1x128xf32> to vector<1x1x128xf32>
      %c0_19 = arith.constant 0 : index
      %c1 = arith.constant 1 : index
      %c0_20 = arith.constant 0 : index
      %26 = vector.load %arg5[%c0_19, %c1, %c0_20] : memref<1x3x128xf32, #tpu.memory_space<vmem>>, vector<1x1x128xf32>
      tpu.vector_store %arg5[%c0_19, %c1, %c0_20], %25 {strides = array<i32>} : memref<1x3x128xf32, #tpu.memory_space<vmem>>, vector<1x1x128xf32>,
      %27 = vector.shape_cast %15 : vector<1x128xf32> to vector<1x1x128xf32>
      %c0_21 = arith.constant 0 : index
      %c2 = arith.constant 2 : index
      %c0_22 = arith.constant 0 : index
      %28 = vector.load %arg5[%c0_21, %c2, %c0_22] : memref<1x3x128xf32, #tpu.memory_space<vmem>>, vector<1x1x128xf32>
      tpu.vector_store %arg5[%c0_21, %c2, %c0_22], %27 {strides = array<i32>} : memref<1x3x128xf32, #tpu.memory_space<vmem>>, vector<1x1x128xf32>,
    } else {
    }
    return
  }
  func.func @transform_0(%arg0: i32, %arg1: i32) -> (i32, i32) {
    %c0_i32 = arith.constant 0 : i32
    return %arg0, %arg1 : i32, i32
  }
  func.func @transform_1(%arg0: i32, %arg1: i32) -> (i32, i32) {
    %c0_i32 = arith.constant 0 : i32
    %c0_i32_0 = arith.constant 0 : i32
    return %arg1, %c0_i32 : i32, i32
  }
  func.func @transform_2(%arg0: i32, %arg1: i32) -> (i32, i32) {
    %c0_i32 = arith.constant 0 : i32
    %c0_i32_0 = arith.constant 0 : i32
    return %arg0, %c0_i32 : i32, i32
  }
  func.func @transform_3(%arg0: i32, %arg1: i32) -> (i32, i32, i32) {
    %c0_i32 = arith.constant 0 : i32
    %c0_i32_0 = arith.constant 0 : i32
    %c0_i32_1 = arith.constant 0 : i32
    return %arg0, %c0_i32, %c0_i32_0 : i32, i32, i32
  }
}

module attributes {stable_mosaic.version = 11 : i64} {
  func.func @_conv_stats_kernel(%arg0: i32, %arg1: i32, %arg2: memref<128x72xbf16, #tpu.memory_space<vmem>>, %arg3: memref<72x128xbf16, #tpu.memory_space<vmem>>, %arg4: memref<128x128xbf16, #tpu.memory_space<vmem>>, %arg5: memref<1x3x128xf32, #tpu.memory_space<vmem>>, %arg6: memref<128x128xf32, #tpu.memory_space<vmem>>) attributes {dimension_semantics = [#tpu.dimension_semantics<parallel>, #tpu.dimension_semantics<arbitrary>], iteration_bounds = array<i64: 1, 1>, scalar_prefetch = 0 : i64, scratch_operands = 1 : i64, tpu.core_type = #tpu.core_type<tc>, window_params = [{transform_indices = @transform_0, window_bounds = array<i64: 128, 72>}, {transform_indices = @transform_1, window_bounds = array<i64: 72, 128>}, {transform_indices = @transform_2, window_bounds = array<i64: 128, 128>}, {transform_indices = @transform_3, window_bounds = array<i64: 1, 3, 128>}]} {
    %c0_i32 = arith.constant 0 : i32
    %0 = arith.cmpi eq, %arg1, %c0_i32 : i32
    %1 = arith.extui %0 : i1 to i32
    %c0_i32_0 = arith.constant 0 : i32
    %2 = arith.cmpi ne, %1, %c0_i32_0 : i32
    scf.if %2 {
      %cst_10 = arith.constant 0.000000e+00 : f32
      %12 = vector.broadcast %cst_10 : f32 to vector<128x128xf32>
      %c0_11 = arith.constant 0 : index
      %c0_12 = arith.constant 0 : index
      %13 = vector.load %arg6[%c0_11, %c0_12] : memref<128x128xf32, #tpu.memory_space<vmem>>, vector<128x128xf32>
      tpu.vector_store %arg6[%c0_11, %c0_12], %12 {strides = array<i32>} : memref<128x128xf32, #tpu.memory_space<vmem>>, vector<128x128xf32>,
    } else {
    }
    %c0 = arith.constant 0 : index
    %c0_1 = arith.constant 0 : index
    %3 = vector.load %arg6[%c0, %c0_1] : memref<128x128xf32, #tpu.memory_space<vmem>>, vector<128x128xf32>
    %c0_2 = arith.constant 0 : index
    %c0_3 = arith.constant 0 : index
    %4 = vector.load %arg2[%c0_2, %c0_3] : memref<128x72xbf16, #tpu.memory_space<vmem>>, vector<128x72xbf16>
    %c0_4 = arith.constant 0 : index
    %c0_5 = arith.constant 0 : index
    %5 = vector.load %arg3[%c0_4, %c0_5] : memref<72x128xbf16, #tpu.memory_space<vmem>>, vector<72x128xbf16>
    %cst = arith.constant dense<0.000000e+00> : vector<128x128xf32>
    %6 = tpu.matmul %4, %5, %cst {dimension_numbers = #tpu.dot_dimension_numbers<[1], [0], [0], [1], [0, 0, 1, 1], [], []>} : vector<128x72xbf16>, vector<72x128xbf16>, vector<128x128xf32> -> vector<128x128xf32>
    %7 = arith.addf %3, %6 : vector<128x128xf32>
    %c0_6 = arith.constant 0 : index
    %c0_7 = arith.constant 0 : index
    %8 = vector.load %arg6[%c0_6, %c0_7] : memref<128x128xf32, #tpu.memory_space<vmem>>, vector<128x128xf32>
    tpu.vector_store %arg6[%c0_6, %c0_7], %7 {strides = array<i32>} : memref<128x128xf32, #tpu.memory_space<vmem>>, vector<128x128xf32>,
    %c0_i32_8 = arith.constant 0 : i32
    %9 = arith.cmpi eq, %arg1, %c0_i32_8 : i32
    %10 = arith.extui %9 : i1 to i32
    %c0_i32_9 = arith.constant 0 : i32
    %11 = arith.cmpi ne, %10, %c0_i32_9 : i32
    scf.if %11 {
      %c0_10 = arith.constant 0 : index
      %c0_11 = arith.constant 0 : index
      %12 = vector.load %arg6[%c0_10, %c0_11] : memref<128x128xf32, #tpu.memory_space<vmem>>, vector<128x128xf32>
      %13 = arith.truncf %12 : vector<128x128xf32> to vector<128x128xbf16>
      %c0_12 = arith.constant 0 : index
      %c0_13 = arith.constant 0 : index
      %14 = vector.load %arg4[%c0_12, %c0_13] : memref<128x128xbf16, #tpu.memory_space<vmem>>, vector<128x128xbf16>
      tpu.vector_store %arg4[%c0_12, %c0_13], %13 {strides = array<i32>} : memref<128x128xbf16, #tpu.memory_space<vmem>>, vector<128x128xbf16>,
      %15 = vector.extract_strided_slice %12 {offsets = [0, 0], sizes = [1, 128], strides = [1, 1]} : vector<128x128xf32> to vector<1x128xf32>
      %16 = vector.broadcast %15 : vector<1x128xf32> to vector<128x128xf32>
      %17 = arith.subf %12, %16 : vector<128x128xf32>
      %cst_14 = arith.constant dense<0.000000e+00> : vector<128xf32>
      %18 = vector.multi_reduction <add>, %17, %cst_14 [0] : vector<128x128xf32> to vector<128xf32>
      %19 = vector.shape_cast %18 : vector<128xf32> to vector<1x128xf32>
      %20 = vector.shape_cast %19 : vector<1x128xf32> to vector<1x1x128xf32>
      %c0_15 = arith.constant 0 : index
      %c0_16 = arith.constant 0 : index
      %c0_17 = arith.constant 0 : index
      %21 = vector.load %arg5[%c0_15, %c0_16, %c0_17] : memref<1x3x128xf32, #tpu.memory_space<vmem>>, vector<1x1x128xf32>
      tpu.vector_store %arg5[%c0_15, %c0_16, %c0_17], %20 {strides = array<i32>} : memref<1x3x128xf32, #tpu.memory_space<vmem>>, vector<1x1x128xf32>,
      %22 = arith.mulf %17, %17 : vector<128x128xf32>
      %cst_18 = arith.constant dense<0.000000e+00> : vector<128xf32>
      %23 = vector.multi_reduction <add>, %22, %cst_18 [0] : vector<128x128xf32> to vector<128xf32>
      %24 = vector.shape_cast %23 : vector<128xf32> to vector<1x128xf32>
      %25 = vector.shape_cast %24 : vector<1x128xf32> to vector<1x1x128xf32>
      %c0_19 = arith.constant 0 : index
      %c1 = arith.constant 1 : index
      %c0_20 = arith.constant 0 : index
      %26 = vector.load %arg5[%c0_19, %c1, %c0_20] : memref<1x3x128xf32, #tpu.memory_space<vmem>>, vector<1x1x128xf32>
      tpu.vector_store %arg5[%c0_19, %c1, %c0_20], %25 {strides = array<i32>} : memref<1x3x128xf32, #tpu.memory_space<vmem>>, vector<1x1x128xf32>,
      %27 = vector.shape_cast %15 : vector<1x128xf32> to vector<1x1x128xf32>
      %c0_21 = arith.constant 0 : index
      %c2 = arith.constant 2 : index
      %c0_22 = arith.constant 0 : index
      %28 = vector.load %arg5[%c0_21, %c2, %c0_22] : memref<1x3x128xf32, #tpu.memory_space<vmem>>, vector<1x1x128xf32>
      tpu.vector_store %arg5[%c0_21, %c2, %c0_22], %27 {strides = array<i32>} : memref<1x3x128xf32, #tpu.memory_space<vmem>>, vector<1x1x128xf32>,
    } else {
    }
    return
  }
  func.func @transform_0(%arg0: i32, %arg1: i32) -> (i32, i32) {
    %c0_i32 = arith.constant 0 : i32
    return %arg0, %arg1 : i32, i32
  }
  func.func @transform_1(%arg0: i32, %arg1: i32) -> (i32, i32) {
    %c0_i32 = arith.constant 0 : i32
    %c0_i32_0 = arith.constant 0 : i32
    return %arg1, %c0_i32 : i32, i32
  }
  func.func @transform_2(%arg0: i32, %arg1: i32) -> (i32, i32) {
    %c0_i32 = arith.constant 0 : i32
    %c0_i32_0 = arith.constant 0 : i32
    return %arg0, %c0_i32 : i32, i32
  }
  func.func @transform_3(%arg0: i32, %arg1: i32) -> (i32, i32, i32) {
    %c0_i32 = arith.constant 0 : i32
    %c0_i32_0 = arith.constant 0 : i32
    %c0_i32_1 = arith.constant 0 : i32
    return %arg0, %c0_i32, %c0_i32_0 : i32, i32, i32
  }
}

module attributes {stable_mosaic.version = 11 : i64} {
  func.func @_bn_add_relu_proj_kernel(%arg0: i32, %arg1: memref<128x128xbf16, #tpu.memory_space<vmem>>, %arg2: memref<128x128xbf16, #tpu.memory_space<vmem>>, %arg3: memref<1x128xf32, #tpu.memory_space<vmem>>, %arg4: memref<1x128xf32, #tpu.memory_space<vmem>>, %arg5: memref<1x128xf32, #tpu.memory_space<vmem>>, %arg6: memref<1x128xf32, #tpu.memory_space<vmem>>, %arg7: memref<128x128xf32, #tpu.memory_space<vmem>>) attributes {dimension_semantics = [#tpu.dimension_semantics<parallel>], iteration_bounds = array<i64: 1>, scalar_prefetch = 0 : i64, scratch_operands = 0 : i64, tpu.core_type = #tpu.core_type<tc>, window_params = [{transform_indices = @transform_0, window_bounds = array<i64: 128, 128>}, {transform_indices = @transform_1, window_bounds = array<i64: 128, 128>}, {pipeline_mode = #tpu.pipeline_mode<synchronous>, transform_indices = @transform_2, window_bounds = array<i64: 1, 128>}, {pipeline_mode = #tpu.pipeline_mode<synchronous>, transform_indices = @transform_3, window_bounds = array<i64: 1, 128>}, {pipeline_mode = #tpu.pipeline_mode<synchronous>, transform_indices = @transform_4, window_bounds = array<i64: 1, 128>}, {pipeline_mode = #tpu.pipeline_mode<synchronous>, transform_indices = @transform_5, window_bounds = array<i64: 1, 128>}, {transform_indices = @transform_6, window_bounds = array<i64: 128, 128>}]} {
    %c0 = arith.constant 0 : index
    %c0_0 = arith.constant 0 : index
    %0 = vector.load %arg1[%c0, %c0_0] : memref<128x128xbf16, #tpu.memory_space<vmem>>, vector<128x128xbf16>
    %1 = arith.extf %0 : vector<128x128xbf16> to vector<128x128xf32>
    %c0_1 = arith.constant 0 : index
    %c0_2 = arith.constant 0 : index
    %2 = vector.load %arg3[%c0_1, %c0_2] : memref<1x128xf32, #tpu.memory_space<vmem>>, vector<1x128xf32>
    %3 = vector.broadcast %2 : vector<1x128xf32> to vector<128x128xf32>
    %4 = arith.mulf %1, %3 : vector<128x128xf32>
    %c0_3 = arith.constant 0 : index
    %c0_4 = arith.constant 0 : index
    %5 = vector.load %arg4[%c0_3, %c0_4] : memref<1x128xf32, #tpu.memory_space<vmem>>, vector<1x128xf32>
    %6 = vector.broadcast %5 : vector<1x128xf32> to vector<128x128xf32>
    %7 = arith.addf %4, %6 : vector<128x128xf32>
    %c0_5 = arith.constant 0 : index
    %c0_6 = arith.constant 0 : index
    %8 = vector.load %arg2[%c0_5, %c0_6] : memref<128x128xbf16, #tpu.memory_space<vmem>>, vector<128x128xbf16>
    %9 = arith.extf %8 : vector<128x128xbf16> to vector<128x128xf32>
    %c0_7 = arith.constant 0 : index
    %c0_8 = arith.constant 0 : index
    %10 = vector.load %arg5[%c0_7, %c0_8] : memref<1x128xf32, #tpu.memory_space<vmem>>, vector<1x128xf32>
    %11 = vector.broadcast %10 : vector<1x128xf32> to vector<128x128xf32>
    %12 = arith.mulf %9, %11 : vector<128x128xf32>
    %13 = arith.addf %7, %12 : vector<128x128xf32>
    %c0_9 = arith.constant 0 : index
    %c0_10 = arith.constant 0 : index
    %14 = vector.load %arg6[%c0_9, %c0_10] : memref<1x128xf32, #tpu.memory_space<vmem>>, vector<1x128xf32>
    %15 = vector.broadcast %14 : vector<1x128xf32> to vector<128x128xf32>
    %16 = arith.addf %13, %15 : vector<128x128xf32>
    %cst = arith.constant 0.000000e+00 : f32
    %17 = vector.broadcast %cst : f32 to vector<128x128xf32>
    %18 = arith.maximumf %16, %17 : vector<128x128xf32>
    %c0_11 = arith.constant 0 : index
    %c0_12 = arith.constant 0 : index
    %19 = vector.load %arg7[%c0_11, %c0_12] : memref<128x128xf32, #tpu.memory_space<vmem>>, vector<128x128xf32>
    tpu.vector_store %arg7[%c0_11, %c0_12], %18 {strides = array<i32>} : memref<128x128xf32, #tpu.memory_space<vmem>>, vector<128x128xf32>,
    return
  }
  func.func @transform_0(%arg0: i32) -> (i32, i32) {
    %c0_i32 = arith.constant 0 : i32
    %c0_i32_0 = arith.constant 0 : i32
    return %arg0, %c0_i32 : i32, i32
  }
  func.func @transform_1(%arg0: i32) -> (i32, i32) {
    %c0_i32 = arith.constant 0 : i32
    %c0_i32_0 = arith.constant 0 : i32
    return %arg0, %c0_i32 : i32, i32
  }
  func.func @transform_2(%arg0: i32) -> (i32, i32) {
    %c0_i32 = arith.constant 0 : i32
    %c0_i32_0 = arith.constant 0 : i32
    %c0_i32_1 = arith.constant 0 : i32
    return %c0_i32, %c0_i32_0 : i32, i32
  }
  func.func @transform_3(%arg0: i32) -> (i32, i32) {
    %c0_i32 = arith.constant 0 : i32
    %c0_i32_0 = arith.constant 0 : i32
    %c0_i32_1 = arith.constant 0 : i32
    return %c0_i32, %c0_i32_0 : i32, i32
  }
  func.func @transform_4(%arg0: i32) -> (i32, i32) {
    %c0_i32 = arith.constant 0 : i32
    %c0_i32_0 = arith.constant 0 : i32
    %c0_i32_1 = arith.constant 0 : i32
    return %c0_i32, %c0_i32_0 : i32, i32
  }
  func.func @transform_5(%arg0: i32) -> (i32, i32) {
    %c0_i32 = arith.constant 0 : i32
    %c0_i32_0 = arith.constant 0 : i32
    %c0_i32_1 = arith.constant 0 : i32
    return %c0_i32, %c0_i32_0 : i32, i32
  }
  func.func @transform_6(%arg0: i32) -> (i32, i32) {
    %c0_i32 = arith.constant 0 : i32
    %c0_i32_0 = arith.constant 0 : i32
    return %arg0, %c0_i32 : i32, i32
  }
}

</mosaic_0001>

<llo_original>
// kernel: basic_block_forward.6
$region0: #{basic_block_forward.6}
  #allocation0 [shape = 'u32[]', space=smem, size = 0x4, offset = 0x4, fixed_abs, tag = 'smem constant byte address 0x4 - core index']
  #allocation1 [shape = 'u32[144,128]{1,0:T(1,128)}', space=vmem, size = 0x12000, scoped, tag = 'internal scratch']
  #allocation2 [shape = 'f32[128,128]{1,0:T(8,128)}', space=vmem, size = 0x10000, scoped, tag = 'scratch operand']
  %s0 = inlined_call_operand.vmem [shape: bf16[128,4], index: 0, kind: input, shape index: {}]
  %s1 = inlined_call_operand.vmem [shape: bf16[4,128], index: 1, kind: input, shape index: {}]
  %s2 = inlined_call_operand.vmem [shape: bf16[128,128], index: 2, kind: output, shape index: {0}]
  %s3 = inlined_call_operand.vmem [shape: f32[1,3,128], index: 3, kind: output, shape index: {1}]
  %4 = xla_tuple %s2, %s3
  %s5 = sld [smem:[#allocation0]]
  $region34: #{basic_block_forward.6} parent=0
    _
  %s7 = ssub.s32 1, %s5
  %s8 = scalar_select 0, %s7, %s5
  // Predicated region
  $region2: #{basic_block_forward.6} parent=0 // pred_check
    _
  $region3: #{basic_block_forward.6} parent=0 // pred_check_branch
    %10 = sbr.rel (0) target = $region5
  $region4: #{basic_block_forward.6} parent=0 // pred_region
    _
  $region5: #{basic_block_forward.6} parent=0 // pred_fallthru
    _
  // Predicated region
  $region6: #{basic_block_forward.6} parent=0 // pred_check
    _
  $region7: #{basic_block_forward.6} parent=0 // pred_check_branch
    %12 = sbr.rel (0) target = $region9
  $region8: #{basic_block_forward.6} parent=0 // pred_region
    _
  $region9: #{basic_block_forward.6} parent=0 // pred_fallthru
    _
  %p14 = scmp.eq.s32.totalorder 0, 0
  // Predicated region
  $region10: #{basic_block_forward.6} parent=0 // pred_check
    %p15 = pneg %p14
  $region11: #{basic_block_forward.6} parent=0 // pred_check_branch
    %17 = sbr.rel (%p15) target = $region13
  $region12: #{basic_block_forward.6} parent=0 // pred_region
    %18 = vst [vmem:[#allocation2] sm:$0xff] 0.0
    %19 = vst [vmem:[#allocation2 + $0x8] sm:$0xff] 0.0
    %20 = vst [vmem:[#allocation2 + $0x10] sm:$0xff] 0.0
    %21 = vst [vmem:[#allocation2 + $0x18] sm:$0xff] 0.0
    %22 = vst [vmem:[#allocation2 + $0x20] sm:$0xff] 0.0
    %23 = vst [vmem:[#allocation2 + $0x28] sm:$0xff] 0.0
    %24 = vst [vmem:[#allocation2 + $0x30] sm:$0xff] 0.0
    %25 = vst [vmem:[#allocation2 + $0x38] sm:$0xff] 0.0
    %26 = vst [vmem:[#allocation2 + $0x40] sm:$0xff] 0.0
    %27 = vst [vmem:[#allocation2 + $0x48] sm:$0xff] 0.0
    %28 = vst [vmem:[#allocation2 + $0x50] sm:$0xff] 0.0
    %29 = vst [vmem:[#allocation2 + $0x58] sm:$0xff] 0.0
    %30 = vst [vmem:[#allocation2 + $0x60] sm:$0xff] 0.0
    %31 = vst [vmem:[#allocation2 + $0x68] sm:$0xff] 0.0
    %32 = vst [vmem:[#allocation2 + $0x70] sm:$0xff] 0.0
    %33 = vst [vmem:[#allocation2 + $0x78] sm:$0xff] 0.0
  $region13: #{basic_block_forward.6} parent=0 // pred_fallthru
    _
  %v34 = vld [vmem:[#allocation2] sm:$0xff]
  %v35 = vld [vmem:[#allocation2 + $0x8] sm:$0xff]
  %v36 = vld [vmem:[#allocation2 + $0x10] sm:$0xff]
  %v37 = vld [vmem:[#allocation2 + $0x18] sm:$0xff]
  %v38 = vld [vmem:[#allocation2 + $0x20] sm:$0xff]
  %v39 = vld [vmem:[#allocation2 + $0x28] sm:$0xff]
  %v40 = vld [vmem:[#allocation2 + $0x30] sm:$0xff]
  %v41 = vld [vmem:[#allocation2 + $0x38] sm:$0xff]
  %v42 = vld [vmem:[#allocation2 + $0x40] sm:$0xff]
  %v43 = vld [vmem:[#allocation2 + $0x48] sm:$0xff]
  %v44 = vld [vmem:[#allocation2 + $0x50] sm:$0xff]
  %v45 = vld [vmem:[#allocation2 + $0x58] sm:$0xff]
  %v46 = vld [vmem:[#allocation2 + $0x60] sm:$0xff]
  %v47 = vld [vmem:[#allocation2 + $0x68] sm:$0xff]
  %v48 = vld [vmem:[#allocation2 + $0x70] sm:$0xff]
  %v49 = vld [vmem:[#allocation2 + $0x78] sm:$0xff]
  %v50 = vld [vmem:[%s0] sm:$0xf]
  %v51 = vld [vmem:[%s0 + $0x4] sm:$0xf]
  %v52 = vld [vmem:[%s0 + $0x8] sm:$0xf]
  %v53 = vld [vmem:[%s0 + $0xc] sm:$0xf]
  %v54 = vld [vmem:[%s0 + $0x10] sm:$0xf]
  %v55 = vld [vmem:[%s0 + $0x14] sm:$0xf]
  %v56 = vld [vmem:[%s0 + $0x18] sm:$0xf]
  %v57 = vld [vmem:[%s0 + $0x1c] sm:$0xf]
  %v58 = vld [vmem:[%s0 + $0x20] sm:$0xf]
  %v59 = vld [vmem:[%s0 + $0x24] sm:$0xf]
  %v60 = vld [vmem:[%s0 + $0x28] sm:$0xf]
  %v61 = vld [vmem:[%s0 + $0x2c] sm:$0xf]
  %v62 = vld [vmem:[%s0 + $0x30] sm:$0xf]
  %v63 = vld [vmem:[%s0 + $0x34] sm:$0xf]
  %v64 = vld [vmem:[%s0 + $0x38] sm:$0xf]
  %v65 = vld [vmem:[%s0 + $0x3c] sm:$0xf]
  %v66 = vld [vmem:[%s1] sm:$0x3]
  %v83 = vunpack.c.l.b16 %v50
  %v84 = vunpack.c.l.b16 %v51
  %v85 = vunpack.c.l.b16 %v52
  %v86 = vunpack.c.l.b16 %v53
  %v87 = vunpack.c.l.b16 %v54
  %v88 = vunpack.c.l.b16 %v55
  %v89 = vunpack.c.l.b16 %v56
  %v90 = vunpack.c.l.b16 %v57
  %v91 = vunpack.c.l.b16 %v58
  %v92 = vunpack.c.l.b16 %v59
  %v93 = vunpack.c.l.b16 %v60
  %v94 = vunpack.c.l.b16 %v61
  %v95 = vunpack.c.l.b16 %v62
  %v96 = vunpack.c.l.b16 %v63
  %v97 = vunpack.c.l.b16 %v64
  %v98 = vunpack.c.l.b16 %v65
  %v99 = vpack.c.b16 %v84, %v83
  %v100 = vpack.c.b16 %v86, %v85
  %v101 = vpack.c.b16 %v88, %v87
  %v102 = vpack.c.b16 %v90, %v89
  %v103 = vpack.c.b16 %v92, %v91
  %v104 = vpack.c.b16 %v94, %v93
  %v105 = vpack.c.b16 %v96, %v95
  %v106 = vpack.c.b16 %v98, %v97
  %vm107 = vcmask 31744
  %v109 = vsel %vm107, %v99, 0
  %v112 = vsel %vm107, %v100, 0
  %v115 = vsel %vm107, %v101, 0
  %v118 = vsel %vm107, %v102, 0
  %v121 = vsel %vm107, %v103, 0
  %v124 = vsel %vm107, %v104, 0
  %v127 = vsel %vm107, %v105, 0
  %v130 = vsel %vm107, %v106, 0
  %vm132 = vcmask 1041408
  %v134 = vsel %vm132, %v66, 0
  %136 = vmatprep.subr.bf16.mxu0 0
  %137 = vmatpush1.bf16.msra.mxu0 %v134
  %138 = vmatprep.subr.bf16.mxu0 0
  %139 = vmatpush1.bf16.msra.mxu0 0
  %140 = vmatprep.subr.bf16.mxu0 0
  %141 = vmatpush1.bf16.msra.mxu0 0
  %142 = vmatprep.subr.bf16.mxu0 0
  %143 = vmatpush1.bf16.msra.mxu0 0
  %144 = vmatprep.subr.bf16.mxu0 0
  %145 = vmatpush1.bf16.msra.mxu0 0
  %146 = vmatprep.subr.bf16.mxu0 0
  %147 = vmatpush1.bf16.msra.mxu0 0
  %148 = vmatprep.subr.bf16.mxu0 0
  %149 = vmatpush1.bf16.msra.mxu0 0
  %150 = vmatprep.subr.bf16.mxu0 0
  %151 = vmatpush1.bf16.msra.mxu0 0
  %152 = vmatprep.subr.bf16.mxu0 0
  %153 = vmatpush1.bf16.msra.mxu0 0
  %154 = vmatprep.subr.bf16.mxu0 0
  %155 = vmatpush1.bf16.msra.mxu0 0
  %156 = vmatprep.subr.bf16.mxu0 0
  %157 = vmatpush1.bf16.msra.mxu0 0
  %158 = vmatprep.subr.bf16.mxu0 0
  %159 = vmatpush1.bf16.msra.mxu0 0
  %160 = vmatprep.subr.bf16.mxu0 0
  %161 = vmatpush1.bf16.msra.mxu0 0
  %162 = vmatprep.subr.bf16.mxu0 0
  %163 = vmatpush1.bf16.msra.mxu0 0
  %164 = vmatprep.subr.bf16.mxu0 0
  %165 = vmatpush1.bf16.msra.mxu0 0
  %166 = vmatprep.subr.bf16.mxu0 0
  %167 = vmatpush1.bf16.msra.mxu0 0
  %168 = vmatprep.mubr.bf16.mxu0 0
  %169 = vmatmul.mubr.bf16.gmra.mrb[0].mxu0 %v109
  %v170 = vpop.f32.mrb[0].mxu0
  %v171 = vadd.f32 0.0, %v170
  %v172 = vpop.f32.mrb[0].mxu0
  %v173 = vpop.f32.mrb[0].mxu0
  %v174 = vadd.f32 0.0, %v173
  %v175 = vpop.f32.mrb[0].mxu0
  %176 = vmatprep.mubr.bf16.mxu0 0
  %177 = vmatmul.mubr.bf16.gmra.mrb[0].mxu0 %v112
  %v178 = vpop.f32.mrb[0].mxu0
  %v179 = vadd.f32 0.0, %v178
  %v180 = vpop.f32.mrb[0].mxu0
  %v181 = vpop.f32.mrb[0].mxu0
  %v182 = vadd.f32 0.0, %v181
  %v183 = vpop.f32.mrb[0].mxu0
  %184 = vmatprep.mubr.bf16.mxu0 0
  %185 = vmatmul.mubr.bf16.gmra.mrb[0].mxu0 %v115
  %v186 = vpop.f32.mrb[0].mxu0
  %v187 = vadd.f32 0.0, %v186
  %v188 = vpop.f32.mrb[0].mxu0
  %v189 = vpop.f32.mrb[0].mxu0
  %v190 = vadd.f32 0.0, %v189
  %v191 = vpop.f32.mrb[0].mxu0
  %192 = vmatprep.mubr.bf16.mxu0 0
  %193 = vmatmul.mubr.bf16.gmra.mrb[0].mxu0 %v118
  %v194 = vpop.f32.mrb[0].mxu0
  %v195 = vadd.f32 0.0, %v194
  %v196 = vpop.f32.mrb[0].mxu0
  %v197 = vpop.f32.mrb[0].mxu0
  %v198 = vadd.f32 0.0, %v197
  %v199 = vpop.f32.mrb[0].mxu0
  %200 = vmatprep.mubr.bf16.mxu0 0
  %201 = vmatmul.mubr.bf16.gmra.mrb[0].mxu0 %v121
  %v202 = vpop.f32.mrb[0].mxu0
  %v203 = vadd.f32 0.0, %v202
  %v204 = vpop.f32.mrb[0].mxu0
  %v205 = vpop.f32.mrb[0].mxu0
  %v206 = vadd.f32 0.0, %v205
  %v207 = vpop.f32.mrb[0].mxu0
  %208 = vmatprep.mubr.bf16.mxu0 0
  %209 = vmatmul.mubr.bf16.gmra.mrb[0].mxu0 %v124
  %v210 = vpop.f32.mrb[0].mxu0
  %v211 = vadd.f32 0.0, %v210
  %v212 = vpop.f32.mrb[0].mxu0
  %v213 = vpop.f32.mrb[0].mxu0
  %v214 = vadd.f32 0.0, %v213
  %v215 = vpop.f32.mrb[0].mxu0
  %216 = vmatprep.mubr.bf16.mxu0 0
  %217 = vmatmul.mubr.bf16.gmra.mrb[0].mxu0 %v127
  %v218 = vpop.f32.mrb[0].mxu0
  %v219 = vadd.f32 0.0, %v218
  %v220 = vpop.f32.mrb[0].mxu0
  %v221 = vpop.f32.mrb[0].mxu0
  %v222 = vadd.f32 0.0, %v221
  %v223 = vpop.f32.mrb[0].mxu0
  %224 = vmatprep.mubr.bf16.mxu0 0
  %225 = vmatmul.mubr.bf16.gmra.mrb[0].mxu0 %v130
  %v226 = vpop.f32.mrb[0].mxu0
  %v227 = vadd.f32 0.0, %v226
  %v228 = vpop.f32.mrb[0].mxu0
  %v229 = vpop.f32.mrb[0].mxu0
  %v230 = vadd.f32 0.0, %v229
  %v231 = vpop.f32.mrb[0].mxu0
  %232 = vdwg.mxu0
  %v233 = vadd.f32 %v34, %v171
  %v234 = vadd.f32 %v35, %v174
  %v235 = vadd.f32 %v36, %v179
  %v236 = vadd.f32 %v37, %v182
  %v237 = vadd.f32 %v38, %v187
  %v238 = vadd.f32 %v39, %v190
  %v239 = vadd.f32 %v40, %v195
  %v240 = vadd.f32 %v41, %v198
  %v241 = vadd.f32 %v42, %v203
  %v242 = vadd.f32 %v43, %v206
  %v243 = vadd.f32 %v44, %v211
  %v244 = vadd.f32 %v45, %v214
  %v245 = vadd.f32 %v46, %v219
  %v246 = vadd.f32 %v47, %v222
  %v247 = vadd.f32 %v48, %v227
  %v248 = vadd.f32 %v49, %v230
  %249 = vst [vmem:[#allocation2] sm:$0xff] %v233
  %250 = vst [vmem:[#allocation2 + $0x8] sm:$0xff] %v234
  %251 = vst [vmem:[#allocation2 + $0x10] sm:$0xff] %v235
  %252 = vst [vmem:[#allocation2 + $0x18] sm:$0xff] %v236
  %253 = vst [vmem:[#allocation2 + $0x20] sm:$0xff] %v237
  %254 = vst [vmem:[#allocation2 + $0x28] sm:$0xff] %v238
  %255 = vst [vmem:[#allocation2 + $0x30] sm:$0xff] %v239
  %256 = vst [vmem:[#allocation2 + $0x38] sm:$0xff] %v240
  %257 = vst [vmem:[#allocation2 + $0x40] sm:$0xff] %v241
  %258 = vst [vmem:[#allocation2 + $0x48] sm:$0xff] %v242
  %259 = vst [vmem:[#allocation2 + $0x50] sm:$0xff] %v243
  %260 = vst [vmem:[#allocation2 + $0x58] sm:$0xff] %v244
  %261 = vst [vmem:[#allocation2 + $0x60] sm:$0xff] %v245
  %262 = vst [vmem:[#allocation2 + $0x68] sm:$0xff] %v246
  %263 = vst [vmem:[#allocation2 + $0x70] sm:$0xff] %v247
  %264 = vst [vmem:[#allocation2 + $0x78] sm:$0xff] %v248
  // Predicated region
  $region14: #{basic_block_forward.6} parent=0 // pred_check
    %p265 = pneg %p14
  $region15: #{basic_block_forward.6} parent=0 // pred_check_branch
    %267 = sbr.rel (%p265) target = $region17
  $region16: #{basic_block_forward.6} parent=0 // pred_region
    %v268 = vld [vmem:[#allocation2] sm:$0xff]
    %v269 = vld [vmem:[#allocation2 + $0x8] sm:$0xff]
    %v270 = vld [vmem:[#allocation2 + $0x10] sm:$0xff]
    %v271 = vld [vmem:[#allocation2 + $0x18] sm:$0xff]
    %v272 = vld [vmem:[#allocation2 + $0x20] sm:$0xff]
    %v273 = vld [vmem:[#allocation2 + $0x28] sm:$0xff]
    %v274 = vld [vmem:[#allocation2 + $0x30] sm:$0xff]
    %v275 = vld [vmem:[#allocation2 + $0x38] sm:$0xff]
    %v276 = vld [vmem:[#allocation2 + $0x40] sm:$0xff]
    %v277 = vld [vmem:[#allocation2 + $0x48] sm:$0xff]
    %v278 = vld [vmem:[#allocation2 + $0x50] sm:$0xff]
    %v279 = vld [vmem:[#allocation2 + $0x58] sm:$0xff]
    %v280 = vld [vmem:[#allocation2 + $0x60] sm:$0xff]
    %v281 = vld [vmem:[#allocation2 + $0x68] sm:$0xff]
    %v282 = vld [vmem:[#allocation2 + $0x70] sm:$0xff]
    %v283 = vld [vmem:[#allocation2 + $0x78] sm:$0xff]
    %v284 = vpack.c.bf16 %v269, %v268
    %v285 = vpack.c.bf16 %v271, %v270
    %v286 = vpack.c.bf16 %v273, %v272
    %v287 = vpack.c.bf16 %v275, %v274
    %v288 = vpack.c.bf16 %v277, %v276
    %v289 = vpack.c.bf16 %v279, %v278
    %v290 = vpack.c.bf16 %v281, %v280
    %v291 = vpack.c.bf16 %v283, %v282
    %v300 = vunpack.c.l.b16 %v284
    %v301 = vunpack.c.h.b16 %v284
    %v302 = vunpack.c.l.b16 %v285
    %v303 = vunpack.c.h.b16 %v285
    %v304 = vunpack.c.l.b16 %v286
    %v305 = vunpack.c.h.b16 %v286
    %v306 = vunpack.c.l.b16 %v287
    %v307 = vunpack.c.h.b16 %v287
    %v308 = vunpack.c.l.b16 %v288
    %v309 = vunpack.c.h.b16 %v288
    %v310 = vunpack.c.l.b16 %v289
    %v311 = vunpack.c.h.b16 %v289
    %v312 = vunpack.c.l.b16 %v290
    %v313 = vunpack.c.h.b16 %v290
    %v314 = vunpack.c.l.b16 %v291
    %v315 = vunpack.c.h.b16 %v291
    %v316 = vpack.c.b16 %v300, %v300
    %v317 = vpack.c.b16 %v301, %v301
    %v318 = vpack.c.b16 %v302, %v302
    %v319 = vpack.c.b16 %v303, %v303
    %v320 = vpack.c.b16 %v304, %v304
    %v321 = vpack.c.b16 %v305, %v305
    %v322 = vpack.c.b16 %v306, %v306
    %v323 = vpack.c.b16 %v307, %v307
    %v324 = vpack.c.b16 %v308, %v308
    %v325 = vpack.c.b16 %v309, %v309
    %v326 = vpack.c.b16 %v310, %v310
    %v327 = vpack.c.b16 %v311, %v311
    %v328 = vpack.c.b16 %v312, %v312
    %v329 = vpack.c.b16 %v313, %v313
    %v330 = vpack.c.b16 %v314, %v314
    %v331 = vpack.c.b16 %v315, %v315
    %348 = vst [vmem:[%s2] sm:$0xf] %v316
    %349 = vst [vmem:[%s2 + $0x4] sm:$0xf] %v317
    %350 = vst [vmem:[%s2 + $0x8] sm:$0xf] %v318
    %351 = vst [vmem:[%s2 + $0xc] sm:$0xf] %v319
    %352 = vst [vmem:[%s2 + $0x10] sm:$0xf] %v320
    %353 = vst [vmem:[%s2 + $0x14] sm:$0xf] %v321
    %354 = vst [vmem:[%s2 + $0x18] sm:$0xf] %v322
    %355 = vst [vmem:[%s2 + $0x1c] sm:$0xf] %v323
    %356 = vst [vmem:[%s2 + $0x20] sm:$0xf] %v324
    %357 = vst [vmem:[%s2 + $0x24] sm:$0xf] %v325
    %358 = vst [vmem:[%s2 + $0x28] sm:$0xf] %v326
    %359 = vst [vmem:[%s2 + $0x2c] sm:$0xf] %v327
    %360 = vst [vmem:[%s2 + $0x30] sm:$0xf] %v328
    %361 = vst [vmem:[%s2 + $0x34] sm:$0xf] %v329
    %362 = vst [vmem:[%s2 + $0x38] sm:$0xf] %v330
    %363 = vst [vmem:[%s2 + $0x3c] sm:$0xf] %v331
    %v364 = vlaneseq
    %v365 = vshrl.u32 %v364, 7
    %v366 = vsub.s32 0, %v365
    %v367 = vrot.slane %v268, %v366
    %v368 = vsub.f32 %v268, %v367
    %v369 = vsub.f32 %v269, %v367
    %v370 = vsub.f32 %v270, %v367
    %v371 = vsub.f32 %v271, %v367
    %v372 = vsub.f32 %v272, %v367
    %v373 = vsub.f32 %v273, %v367
    %v374 = vsub.f32 %v274, %v367
    %v375 = vsub.f32 %v275, %v367
    %v376 = vsub.f32 %v276, %v367
    %v377 = vsub.f32 %v277, %v367
    %v378 = vsub.f32 %v278, %v367
    %v379 = vsub.f32 %v279, %v367
    %v380 = vsub.f32 %v280, %v367
    %v381 = vsub.f32 %v281, %v367
    %v382 = vsub.f32 %v282, %v367
    %v383 = vsub.f32 %v283, %v367
    %v384 = vadd.f32 %v368, %v369
    %v385 = vadd.f32 %v384, %v370
    %v386 = vadd.f32 %v385, %v371
    %v387 = vadd.f32 %v386, %v372
    %v388 = vadd.f32 %v387, %v373
    %v389 = vadd.f32 %v388, %v374
    %v390 = vadd.f32 %v389, %v375
    %v391 = vadd.f32 %v390, %v376
    %v392 = vadd.f32 %v391, %v377
    %v393 = vadd.f32 %v392, %v378
    %v394 = vadd.f32 %v393, %v379
    %v395 = vadd.f32 %v394, %v380
    %v396 = vadd.f32 %v395, %v381
    %v397 = vadd.f32 %v396, %v382
    %v398 = vadd.f32 %v397, %v383
    %v399 = vrot.slane %v398, 4
    %v400 = vadd.f32 %v398, %v399
    %v401 = vrot.slane %v400, 2
    %v402 = vadd.f32 %v400, %v401
    %v403 = vrot.slane %v402, 1
    %v404 = vadd.f32 %v402, %v403
    %405 = vst [vmem:[%s3] sm:$0x1] %v404
    %v406 = vmul.f32 %v368, %v368
    %v407 = vmul.f32 %v369, %v369
    %v408 = vmul.f32 %v370, %v370
    %v409 = vmul.f32 %v371, %v371
    %v410 = vmul.f32 %v372, %v372
    %v411 = vmul.f32 %v373, %v373
    %v412 = vmul.f32 %v374, %v374
    %v413 = vmul.f32 %v375, %v375
    %v414 = vmul.f32 %v376, %v376
    %v415 = vmul.f32 %v377, %v377
    %v416 = vmul.f32 %v378, %v378
    %v417 = vmul.f32 %v379, %v379
    %v418 = vmul.f32 %v380, %v380
    %v419 = vmul.f32 %v381, %v381
    %v420 = vmul.f32 %v382, %v382
    %v421 = vmul.f32 %v383, %v383
    %v422 = vadd.f32 %v406, %v407
    %v423 = vadd.f32 %v422, %v408
    %v424 = vadd.f32 %v423, %v409
    %v425 = vadd.f32 %v424, %v410
    %v426 = vadd.f32 %v425, %v411
    %v427 = vadd.f32 %v426, %v412
    %v428 = vadd.f32 %v427, %v413
    %v429 = vadd.f32 %v428, %v414
    %v430 = vadd.f32 %v429, %v415
    %v431 = vadd.f32 %v430, %v416
    %v432 = vadd.f32 %v431, %v417
    %v433 = vadd.f32 %v432, %v418
    %v434 = vadd.f32 %v433, %v419
    %v435 = vadd.f32 %v434, %v420
    %v436 = vadd.f32 %v435, %v421
    %v437 = vrot.slane %v436, 4
    %v438 = vadd.f32 %v436, %v437
    %v439 = vrot.slane %v438, 2
    %v440 = vadd.f32 %v438, %v439
    %v441 = vrot.slane %v440, 1
    %v442 = vadd.f32 %v440, %v441
    %443 = vst [vmem:[%s3 + $0x1] sm:$0x1] %v442
    %444 = vst [vmem:[%s3 + $0x2] sm:$0x1] %v268
  $region17: #{basic_block_forward.6} parent=0 // pred_fallthru
    _
  // Predicated region
  $region18: #{basic_block_forward.6} parent=0 // pred_check
    _
  $region19: #{basic_block_forward.6} parent=0 // pred_check_branch
    %446 = sbr.rel (0) target = $region21
  $region20: #{basic_block_forward.6} parent=0 // pred_region
    _
  $region21: #{basic_block_forward.6} parent=0 // pred_fallthru
    _
  // Predicated region
  $region22: #{basic_block_forward.6} parent=0 // pred_check
    _
  $region23: #{basic_block_forward.6} parent=0 // pred_check_branch
    %448 = sbr.rel (0) target = $region25
  $region24: #{basic_block_forward.6} parent=0 // pred_region
    _
  $region25: #{basic_block_forward.6} parent=0 // pred_fallthru
    _
  // Predicated region
  $region26: #{basic_block_forward.6} parent=0 // pred_check
    _
  $region27: #{basic_block_forward.6} parent=0 // pred_check_branch
    %450 = sbr.rel (0) target = $region29
  $region28: #{basic_block_forward.6} parent=0 // pred_region
    _
  $region29: #{basic_block_forward.6} parent=0 // pred_fallthru
    _
  // Predicated region
  $region30: #{basic_block_forward.6} parent=0 // pred_check
    _
  $region31: #{basic_block_forward.6} parent=0 // pred_check_branch
    %452 = sbr.rel (0) target = $region33
  $region32: #{basic_block_forward.6} parent=0 // pred_region
    _
  $region33: #{basic_block_forward.6} parent=0 // pred_fallthru
    _

// kernel: basic_block_forward.4
$region0: #{basic_block_forward.4}
  #allocation0 [shape = 'u32[]', space=smem, size = 0x4, offset = 0x4, fixed_abs, tag = 'smem constant byte address 0x4 - core index']
  #allocation1 [shape = 'u32[144,128]{1,0:T(1,128)}', space=vmem, size = 0x12000, scoped, tag = 'internal scratch']
  #allocation2 [shape = 'f32[128,128]{1,0:T(8,128)}', space=vmem, size = 0x10000, scoped, tag = 'scratch operand']
  %s0 = inlined_call_operand.vmem [shape: bf16[128,36], index: 0, kind: input, shape index: {}]
  %s1 = inlined_call_operand.vmem [shape: bf16[36,128], index: 1, kind: input, shape index: {}]
  %s2 = inlined_call_operand.vmem [shape: bf16[128,128], index: 2, kind: output, shape index: {0}]
  %s3 = inlined_call_operand.vmem [shape: f32[1,3,128], index: 3, kind: output, shape index: {1}]
  %4 = xla_tuple %s2, %s3
  %s5 = sld [smem:[#allocation0]]
  $region34: #{basic_block_forward.4} parent=0
    _
  %s7 = ssub.s32 1, %s5
  %s8 = scalar_select 0, %s7, %s5
  // Predicated region
  $region2: #{basic_block_forward.4} parent=0 // pred_check
    _
  $region3: #{basic_block_forward.4} parent=0 // pred_check_branch
    %10 = sbr.rel (0) target = $region5
  $region4: #{basic_block_forward.4} parent=0 // pred_region
    _
  $region5: #{basic_block_forward.4} parent=0 // pred_fallthru
    _
  // Predicated region
  $region6: #{basic_block_forward.4} parent=0 // pred_check
    _
  $region7: #{basic_block_forward.4} parent=0 // pred_check_branch
    %12 = sbr.rel (0) target = $region9
  $region8: #{basic_block_forward.4} parent=0 // pred_region
    _
  $region9: #{basic_block_forward.4} parent=0 // pred_fallthru
    _
  %p14 = scmp.eq.s32.totalorder 0, 0
  // Predicated region
  $region10: #{basic_block_forward.4} parent=0 // pred_check
    %p15 = pneg %p14
  $region11: #{basic_block_forward.4} parent=0 // pred_check_branch
    %17 = sbr.rel (%p15) target = $region13
  $region12: #{basic_block_forward.4} parent=0 // pred_region
    %18 = vst [vmem:[#allocation2] sm:$0xff] 0.0
    %19 = vst [vmem:[#allocation2 + $0x8] sm:$0xff] 0.0
    %20 = vst [vmem:[#allocation2 + $0x10] sm:$0xff] 0.0
    %21 = vst [vmem:[#allocation2 + $0x18] sm:$0xff] 0.0
    %22 = vst [vmem:[#allocation2 + $0x20] sm:$0xff] 0.0
    %23 = vst [vmem:[#allocation2 + $0x28] sm:$0xff] 0.0
    %24 = vst [vmem:[#allocation2 + $0x30] sm:$0xff] 0.0
    %25 = vst [vmem:[#allocation2 + $0x38] sm:$0xff] 0.0
    %26 = vst [vmem:[#allocation2 + $0x40] sm:$0xff] 0.0
    %27 = vst [vmem:[#allocation2 + $0x48] sm:$0xff] 0.0
    %28 = vst [vmem:[#allocation2 + $0x50] sm:$0xff] 0.0
    %29 = vst [vmem:[#allocation2 + $0x58] sm:$0xff] 0.0
    %30 = vst [vmem:[#allocation2 + $0x60] sm:$0xff] 0.0
    %31 = vst [vmem:[#allocation2 + $0x68] sm:$0xff] 0.0
    %32 = vst [vmem:[#allocation2 + $0x70] sm:$0xff] 0.0
    %33 = vst [vmem:[#allocation2 + $0x78] sm:$0xff] 0.0
  $region13: #{basic_block_forward.4} parent=0 // pred_fallthru
    _
  %v34 = vld [vmem:[#allocation2] sm:$0xff]
  %v35 = vld [vmem:[#allocation2 + $0x8] sm:$0xff]
  %v36 = vld [vmem:[#allocation2 + $0x10] sm:$0xff]
  %v37 = vld [vmem:[#allocation2 + $0x18] sm:$0xff]
  %v38 = vld [vmem:[#allocation2 + $0x20] sm:$0xff]
  %v39 = vld [vmem:[#allocation2 + $0x28] sm:$0xff]
  %v40 = vld [vmem:[#allocation2 + $0x30] sm:$0xff]
  %v41 = vld [vmem:[#allocation2 + $0x38] sm:$0xff]
  %v42 = vld [vmem:[#allocation2 + $0x40] sm:$0xff]
  %v43 = vld [vmem:[#allocation2 + $0x48] sm:$0xff]
  %v44 = vld [vmem:[#allocation2 + $0x50] sm:$0xff]
  %v45 = vld [vmem:[#allocation2 + $0x58] sm:$0xff]
  %v46 = vld [vmem:[#allocation2 + $0x60] sm:$0xff]
  %v47 = vld [vmem:[#allocation2 + $0x68] sm:$0xff]
  %v48 = vld [vmem:[#allocation2 + $0x70] sm:$0xff]
  %v49 = vld [vmem:[#allocation2 + $0x78] sm:$0xff]
  %v50 = vld [vmem:[%s0] sm:$0xf]
  %v51 = vld [vmem:[%s0 + $0x4] sm:$0xf]
  %v52 = vld [vmem:[%s0 + $0x8] sm:$0xf]
  %v53 = vld [vmem:[%s0 + $0xc] sm:$0xf]
  %v54 = vld [vmem:[%s0 + $0x10] sm:$0xf]
  %v55 = vld [vmem:[%s0 + $0x14] sm:$0xf]
  %v56 = vld [vmem:[%s0 + $0x18] sm:$0xf]
  %v57 = vld [vmem:[%s0 + $0x1c] sm:$0xf]
  %v58 = vld [vmem:[%s0 + $0x20] sm:$0xf]
  %v59 = vld [vmem:[%s0 + $0x24] sm:$0xf]
  %v60 = vld [vmem:[%s0 + $0x28] sm:$0xf]
  %v61 = vld [vmem:[%s0 + $0x2c] sm:$0xf]
  %v62 = vld [vmem:[%s0 + $0x30] sm:$0xf]
  %v63 = vld [vmem:[%s0 + $0x34] sm:$0xf]
  %v64 = vld [vmem:[%s0 + $0x38] sm:$0xf]
  %v65 = vld [vmem:[%s0 + $0x3c] sm:$0xf]
  %v66 = vld [vmem:[%s1] sm:$0xf]
  %v67 = vld [vmem:[%s1 + $0x4] sm:$0xf]
  %v68 = vld [vmem:[%s1 + $0x8] sm:$0xf]
  %v69 = vld [vmem:[%s1 + $0xc] sm:$0xf]
  %v70 = vld [vmem:[%s1 + $0x10] sm:$0x3]
  %v87 = vunpack.c.l.b16 %v50
  %v88 = vunpack.c.l.b16 %v51
  %v89 = vunpack.c.l.b16 %v52
  %v90 = vunpack.c.l.b16 %v53
  %v91 = vunpack.c.l.b16 %v54
  %v92 = vunpack.c.l.b16 %v55
  %v93 = vunpack.c.l.b16 %v56
  %v94 = vunpack.c.l.b16 %v57
  %v95 = vunpack.c.l.b16 %v58
  %v96 = vunpack.c.l.b16 %v59
  %v97 = vunpack.c.l.b16 %v60
  %v98 = vunpack.c.l.b16 %v61
  %v99 = vunpack.c.l.b16 %v62
  %v100 = vunpack.c.l.b16 %v63
  %v101 = vunpack.c.l.b16 %v64
  %v102 = vunpack.c.l.b16 %v65
  %v103 = vpack.c.b16 %v88, %v87
  %v104 = vpack.c.b16 %v90, %v89
  %v105 = vpack.c.b16 %v92, %v91
  %v106 = vpack.c.b16 %v94, %v93
  %v107 = vpack.c.b16 %v96, %v95
  %v108 = vpack.c.b16 %v98, %v97
  %v109 = vpack.c.b16 %v100, %v99
  %v110 = vpack.c.b16 %v102, %v101
  %v116 = vunpack.c.l.b16 %v66
  %v117 = vunpack.c.l.b16 %v67
  %v118 = vunpack.c.l.b16 %v68
  %v119 = vunpack.c.l.b16 %v69
  %v120 = vunpack.c.l.b16 %v70
  %v121 = vpack.c.b16 %v117, %v116
  %v122 = vpack.c.b16 %v119, %v118
  %v123 = vpack.c.b16 %v120, %v120
  %vm126 = vcmask 293888
  %v128 = vsel %vm126, %v103, 0
  %v131 = vsel %vm126, %v104, 0
  %v134 = vsel %vm126, %v105, 0
  %v137 = vsel %vm126, %v106, 0
  %v140 = vsel %vm126, %v107, 0
  %v143 = vsel %vm126, %v108, 0
  %v146 = vsel %vm126, %v109, 0
  %v149 = vsel %vm126, %v110, 0
  %vm151 = vcmask 1041408
  %v153 = vsel %vm151, %v123, 0
  %155 = vmatprep.subr.bf16.mxu0 0
  %156 = vmatpush1.bf16.msra.mxu0 %v121
  %157 = vmatprep.subr.bf16.mxu0 0
  %158 = vmatpush1.bf16.msra.mxu0 %v122
  %159 = vmatprep.subr.bf16.mxu0 0
  %160 = vmatpush1.bf16.msra.mxu0 %v153
  %161 = vmatprep.subr.bf16.mxu0 0
  %162 = vmatpush1.bf16.msra.mxu0 0
  %163 = vmatprep.subr.bf16.mxu0 0
  %164 = vmatpush1.bf16.msra.mxu0 0
  %165 = vmatprep.subr.bf16.mxu0 0
  %166 = vmatpush1.bf16.msra.mxu0 0
  %167 = vmatprep.subr.bf16.mxu0 0
  %168 = vmatpush1.bf16.msra.mxu0 0
  %169 = vmatprep.subr.bf16.mxu0 0
  %170 = vmatpush1.bf16.msra.mxu0 0
  %171 = vmatprep.subr.bf16.mxu0 0
  %172 = vmatpush1.bf16.msra.mxu0 0
  %173 = vmatprep.subr.bf16.mxu0 0
  %174 = vmatpush1.bf16.msra.mxu0 0
  %175 = vmatprep.subr.bf16.mxu0 0
  %176 = vmatpush1.bf16.msra.mxu0 0
  %177 = vmatprep.subr.bf16.mxu0 0
  %178 = vmatpush1.bf16.msra.mxu0 0
  %179 = vmatprep.subr.bf16.mxu0 0
  %180 = vmatpush1.bf16.msra.mxu0 0
  %181 = vmatprep.subr.bf16.mxu0 0
  %182 = vmatpush1.bf16.msra.mxu0 0
  %183 = vmatprep.subr.bf16.mxu0 0
  %184 = vmatpush1.bf16.msra.mxu0 0
  %185 = vmatprep.subr.bf16.mxu0 0
  %186 = vmatpush1.bf16.msra.mxu0 0
  %187 = vmatprep.mubr.bf16.mxu0 0
  %188 = vmatmul.mubr.bf16.gmra.mrb[0].mxu0 %v128
  %v189 = vpop.f32.mrb[0].mxu0
  %v190 = vadd.f32 0.0, %v189
  %v191 = vpop.f32.mrb[0].mxu0
  %v192 = vpop.f32.mrb[0].mxu0
  %v193 = vadd.f32 0.0, %v192
  %v194 = vpop.f32.mrb[0].mxu0
  %195 = vmatprep.mubr.bf16.mxu0 0
  %196 = vmatmul.mubr.bf16.gmra.mrb[0].mxu0 %v131
  %v197 = vpop.f32.mrb[0].mxu0
  %v198 = vadd.f32 0.0, %v197
  %v199 = vpop.f32.mrb[0].mxu0
  %v200 = vpop.f32.mrb[0].mxu0
  %v201 = vadd.f32 0.0, %v200
  %v202 = vpop.f32.mrb[0].mxu0
  %203 = vmatprep.mubr.bf16.mxu0 0
  %204 = vmatmul.mubr.bf16.gmra.mrb[0].mxu0 %v134
  %v205 = vpop.f32.mrb[0].mxu0
  %v206 = vadd.f32 0.0, %v205
  %v207 = vpop.f32.mrb[0].mxu0
  %v208 = vpop.f32.mrb[0].mxu0
  %v209 = vadd.f32 0.0, %v208
  %v210 = vpop.f32.mrb[0].mxu0
  %211 = vmatprep.mubr.bf16.mxu0 0
  %212 = vmatmul.mubr.bf16.gmra.mrb[0].mxu0 %v137
  %v213 = vpop.f32.mrb[0].mxu0
  %v214 = vadd.f32 0.0, %v213
  %v215 = vpop.f32.mrb[0].mxu0
  %v216 = vpop.f32.mrb[0].mxu0
  %v217 = vadd.f32 0.0, %v216
  %v218 = vpop.f32.mrb[0].mxu0
  %219 = vmatprep.mubr.bf16.mxu0 0
  %220 = vmatmul.mubr.bf16.gmra.mrb[0].mxu0 %v140
  %v221 = vpop.f32.mrb[0].mxu0
  %v222 = vadd.f32 0.0, %v221
  %v223 = vpop.f32.mrb[0].mxu0
  %v224 = vpop.f32.mrb[0].mxu0
  %v225 = vadd.f32 0.0, %v224
  %v226 = vpop.f32.mrb[0].mxu0
  %227 = vmatprep.mubr.bf16.mxu0 0
  %228 = vmatmul.mubr.bf16.gmra.mrb[0].mxu0 %v143
  %v229 = vpop.f32.mrb[0].mxu0
  %v230 = vadd.f32 0.0, %v229
  %v231 = vpop.f32.mrb[0].mxu0
  %v232 = vpop.f32.mrb[0].mxu0
  %v233 = vadd.f32 0.0, %v232
  %v234 = vpop.f32.mrb[0].mxu0
  %235 = vmatprep.mubr.bf16.mxu0 0
  %236 = vmatmul.mubr.bf16.gmra.mrb[0].mxu0 %v146
  %v237 = vpop.f32.mrb[0].mxu0
  %v238 = vadd.f32 0.0, %v237
  %v239 = vpop.f32.mrb[0].mxu0
  %v240 = vpop.f32.mrb[0].mxu0
  %v241 = vadd.f32 0.0, %v240
  %v242 = vpop.f32.mrb[0].mxu0
  %243 = vmatprep.mubr.bf16.mxu0 0
  %244 = vmatmul.mubr.bf16.gmra.mrb[0].mxu0 %v149
  %v245 = vpop.f32.mrb[0].mxu0
  %v246 = vadd.f32 0.0, %v245
  %v247 = vpop.f32.mrb[0].mxu0
  %v248 = vpop.f32.mrb[0].mxu0
  %v249 = vadd.f32 0.0, %v248
  %v250 = vpop.f32.mrb[0].mxu0
  %251 = vdwg.mxu0
  %v252 = vadd.f32 %v34, %v190
  %v253 = vadd.f32 %v35, %v193
  %v254 = vadd.f32 %v36, %v198
  %v255 = vadd.f32 %v37, %v201
  %v256 = vadd.f32 %v38, %v206
  %v257 = vadd.f32 %v39, %v209
  %v258 = vadd.f32 %v40, %v214
  %v259 = vadd.f32 %v41, %v217
  %v260 = vadd.f32 %v42, %v222
  %v261 = vadd.f32 %v43, %v225
  %v262 = vadd.f32 %v44, %v230
  %v263 = vadd.f32 %v45, %v233
  %v264 = vadd.f32 %v46, %v238
  %v265 = vadd.f32 %v47, %v241
  %v266 = vadd.f32 %v48, %v246
  %v267 = vadd.f32 %v49, %v249
  %268 = vst [vmem:[#allocation2] sm:$0xff] %v252
  %269 = vst [vmem:[#allocation2 + $0x8] sm:$0xff] %v253
  %270 = vst [vmem:[#allocation2 + $0x10] sm:$0xff] %v254
  %271 = vst [vmem:[#allocation2 + $0x18] sm:$0xff] %v255
  %272 = vst [vmem:[#allocation2 + $0x20] sm:$0xff] %v256
  %273 = vst [vmem:[#allocation2 + $0x28] sm:$0xff] %v257
  %274 = vst [vmem:[#allocation2 + $0x30] sm:$0xff] %v258
  %275 = vst [vmem:[#allocation2 + $0x38] sm:$0xff] %v259
  %276 = vst [vmem:[#allocation2 + $0x40] sm:$0xff] %v260
  %277 = vst [vmem:[#allocation2 + $0x48] sm:$0xff] %v261
  %278 = vst [vmem:[#allocation2 + $0x50] sm:$0xff] %v262
  %279 = vst [vmem:[#allocation2 + $0x58] sm:$0xff] %v263
  %280 = vst [vmem:[#allocation2 + $0x60] sm:$0xff] %v264
  %281 = vst [vmem:[#allocation2 + $0x68] sm:$0xff] %v265
  %282 = vst [vmem:[#allocation2 + $0x70] sm:$0xff] %v266
  %283 = vst [vmem:[#allocation2 + $0x78] sm:$0xff] %v267
  // Predicated region
  $region14: #{basic_block_forward.4} parent=0 // pred_check
    %p284 = pneg %p14
  $region15: #{basic_block_forward.4} parent=0 // pred_check_branch
    %286 = sbr.rel (%p284) target = $region17
  $region16: #{basic_block_forward.4} parent=0 // pred_region
    %v287 = vld [vmem:[#allocation2] sm:$0xff]
    %v288 = vld [vmem:[#allocation2 + $0x8] sm:$0xff]
    %v289 = vld [vmem:[#allocation2 + $0x10] sm:$0xff]
    %v290 = vld [vmem:[#allocation2 + $0x18] sm:$0xff]
    %v291 = vld [vmem:[#allocation2 + $0x20] sm:$0xff]
    %v292 = vld [vmem:[#allocation2 + $0x28] sm:$0xff]
    %v293 = vld [vmem:[#allocation2 + $0x30] sm:$0xff]
    %v294 = vld [vmem:[#allocation2 + $0x38] sm:$0xff]
    %v295 = vld [vmem:[#allocation2 + $0x40] sm:$0xff]
    %v296 = vld [vmem:[#allocation2 + $0x48] sm:$0xff]
    %v297 = vld [vmem:[#allocation2 + $0x50] sm:$0xff]
    %v298 = vld [vmem:[#allocation2 + $0x58] sm:$0xff]
    %v299 = vld [vmem:[#allocation2 + $0x60] sm:$0xff]
    %v300 = vld [vmem:[#allocation2 + $0x68] sm:$0xff]
    %v301 = vld [vmem:[#allocation2 + $0x70] sm:$0xff]
    %v302 = vld [vmem:[#allocation2 + $0x78] sm:$0xff]
    %v303 = vpack.c.bf16 %v288, %v287
    %v304 = vpack.c.bf16 %v290, %v289
    %v305 = vpack.c.bf16 %v292, %v291
    %v306 = vpack.c.bf16 %v294, %v293
    %v307 = vpack.c.bf16 %v296, %v295
    %v308 = vpack.c.bf16 %v298, %v297
    %v309 = vpack.c.bf16 %v300, %v299
    %v310 = vpack.c.bf16 %v302, %v301
    %v319 = vunpack.c.l.b16 %v303
    %v320 = vunpack.c.h.b16 %v303
    %v321 = vunpack.c.l.b16 %v304
    %v322 = vunpack.c.h.b16 %v304
    %v323 = vunpack.c.l.b16 %v305
    %v324 = vunpack.c.h.b16 %v305
    %v325 = vunpack.c.l.b16 %v306
    %v326 = vunpack.c.h.b16 %v306
    %v327 = vunpack.c.l.b16 %v307
    %v328 = vunpack.c.h.b16 %v307
    %v329 = vunpack.c.l.b16 %v308
    %v330 = vunpack.c.h.b16 %v308
    %v331 = vunpack.c.l.b16 %v309
    %v332 = vunpack.c.h.b16 %v309
    %v333 = vunpack.c.l.b16 %v310
    %v334 = vunpack.c.h.b16 %v310
    %v335 = vpack.c.b16 %v319, %v319
    %v336 = vpack.c.b16 %v320, %v320
    %v337 = vpack.c.b16 %v321, %v321
    %v338 = vpack.c.b16 %v322, %v322
    %v339 = vpack.c.b16 %v323, %v323
    %v340 = vpack.c.b16 %v324, %v324
    %v341 = vpack.c.b16 %v325, %v325
    %v342 = vpack.c.b16 %v326, %v326
    %v343 = vpack.c.b16 %v327, %v327
    %v344 = vpack.c.b16 %v328, %v328
    %v345 = vpack.c.b16 %v329, %v329
    %v346 = vpack.c.b16 %v330, %v330
    %v347 = vpack.c.b16 %v331, %v331
    %v348 = vpack.c.b16 %v332, %v332
    %v349 = vpack.c.b16 %v333, %v333
    %v350 = vpack.c.b16 %v334, %v334
    %367 = vst [vmem:[%s2] sm:$0xf] %v335
    %368 = vst [vmem:[%s2 + $0x4] sm:$0xf] %v336
    %369 = vst [vmem:[%s2 + $0x8] sm:$0xf] %v337
    %370 = vst [vmem:[%s2 + $0xc] sm:$0xf] %v338
    %371 = vst [vmem:[%s2 + $0x10] sm:$0xf] %v339
    %372 = vst [vmem:[%s2 + $0x14] sm:$0xf] %v340
    %373 = vst [vmem:[%s2 + $0x18] sm:$0xf] %v341
    %374 = vst [vmem:[%s2 + $0x1c] sm:$0xf] %v342
    %375 = vst [vmem:[%s2 + $0x20] sm:$0xf] %v343
    %376 = vst [vmem:[%s2 + $0x24] sm:$0xf] %v344
    %377 = vst [vmem:[%s2 + $0x28] sm:$0xf] %v345
    %378 = vst [vmem:[%s2 + $0x2c] sm:$0xf] %v346
    %379 = vst [vmem:[%s2 + $0x30] sm:$0xf] %v347
    %380 = vst [vmem:[%s2 + $0x34] sm:$0xf] %v348
    %381 = vst [vmem:[%s2 + $0x38] sm:$0xf] %v349
    %382 = vst [vmem:[%s2 + $0x3c] sm:$0xf] %v350
    %v383 = vlaneseq
    %v384 = vshrl.u32 %v383, 7
    %v385 = vsub.s32 0, %v384
    %v386 = vrot.slane %v287, %v385
    %v387 = vsub.f32 %v287, %v386
    %v388 = vsub.f32 %v288, %v386
    %v389 = vsub.f32 %v289, %v386
    %v390 = vsub.f32 %v290, %v386
    %v391 = vsub.f32 %v291, %v386
    %v392 = vsub.f32 %v292, %v386
    %v393 = vsub.f32 %v293, %v386
    %v394 = vsub.f32 %v294, %v386
    %v395 = vsub.f32 %v295, %v386
    %v396 = vsub.f32 %v296, %v386
    %v397 = vsub.f32 %v297, %v386
    %v398 = vsub.f32 %v298, %v386
    %v399 = vsub.f32 %v299, %v386
    %v400 = vsub.f32 %v300, %v386
    %v401 = vsub.f32 %v301, %v386
    %v402 = vsub.f32 %v302, %v386
    %v403 = vadd.f32 %v387, %v388
    %v404 = vadd.f32 %v403, %v389
    %v405 = vadd.f32 %v404, %v390
    %v406 = vadd.f32 %v405, %v391
    %v407 = vadd.f32 %v406, %v392
    %v408 = vadd.f32 %v407, %v393
    %v409 = vadd.f32 %v408, %v394
    %v410 = vadd.f32 %v409, %v395
    %v411 = vadd.f32 %v410, %v396
    %v412 = vadd.f32 %v411, %v397
    %v413 = vadd.f32 %v412, %v398
    %v414 = vadd.f32 %v413, %v399
    %v415 = vadd.f32 %v414, %v400
    %v416 = vadd.f32 %v415, %v401
    %v417 = vadd.f32 %v416, %v402
    %v418 = vrot.slane %v417, 4
    %v419 = vadd.f32 %v417, %v418
    %v420 = vrot.slane %v419, 2
    %v421 = vadd.f32 %v419, %v420
    %v422 = vrot.slane %v421, 1
    %v423 = vadd.f32 %v421, %v422
    %424 = vst [vmem:[%s3] sm:$0x1] %v423
    %v425 = vmul.f32 %v387, %v387
    %v426 = vmul.f32 %v388, %v388
    %v427 = vmul.f32 %v389, %v389
    %v428 = vmul.f32 %v390, %v390
    %v429 = vmul.f32 %v391, %v391
    %v430 = vmul.f32 %v392, %v392
    %v431 = vmul.f32 %v393, %v393
    %v432 = vmul.f32 %v394, %v394
    %v433 = vmul.f32 %v395, %v395
    %v434 = vmul.f32 %v396, %v396
    %v435 = vmul.f32 %v397, %v397
    %v436 = vmul.f32 %v398, %v398
    %v437 = vmul.f32 %v399, %v399
    %v438 = vmul.f32 %v400, %v400
    %v439 = vmul.f32 %v401, %v401
    %v440 = vmul.f32 %v402, %v402
    %v441 = vadd.f32 %v425, %v426
    %v442 = vadd.f32 %v441, %v427
    %v443 = vadd.f32 %v442, %v428
    %v444 = vadd.f32 %v443, %v429
    %v445 = vadd.f32 %v444, %v430
    %v446 = vadd.f32 %v445, %v431
    %v447 = vadd.f32 %v446, %v432
    %v448 = vadd.f32 %v447, %v433
    %v449 = vadd.f32 %v448, %v434
    %v450 = vadd.f32 %v449, %v435
    %v451 = vadd.f32 %v450, %v436
    %v452 = vadd.f32 %v451, %v437
    %v453 = vadd.f32 %v452, %v438
    %v454 = vadd.f32 %v453, %v439
    %v455 = vadd.f32 %v454, %v440
    %v456 = vrot.slane %v455, 4
    %v457 = vadd.f32 %v455, %v456
    %v458 = vrot.slane %v457, 2
    %v459 = vadd.f32 %v457, %v458
    %v460 = vrot.slane %v459, 1
    %v461 = vadd.f32 %v459, %v460
    %462 = vst [vmem:[%s3 + $0x1] sm:$0x1] %v461
    %463 = vst [vmem:[%s3 + $0x2] sm:$0x1] %v287
  $region17: #{basic_block_forward.4} parent=0 // pred_fallthru
    _
  // Predicated region
  $region18: #{basic_block_forward.4} parent=0 // pred_check
    _
  $region19: #{basic_block_forward.4} parent=0 // pred_check_branch
    %465 = sbr.rel (0) target = $region21
  $region20: #{basic_block_forward.4} parent=0 // pred_region
    _
  $region21: #{basic_block_forward.4} parent=0 // pred_fallthru
    _
  // Predicated region
  $region22: #{basic_block_forward.4} parent=0 // pred_check
    _
  $region23: #{basic_block_forward.4} parent=0 // pred_check_branch
    %467 = sbr.rel (0) target = $region25
  $region24: #{basic_block_forward.4} parent=0 // pred_region
    _
  $region25: #{basic_block_forward.4} parent=0 // pred_fallthru
    _
  // Predicated region
  $region26: #{basic_block_forward.4} parent=0 // pred_check
    _
  $region27: #{basic_block_forward.4} parent=0 // pred_check_branch
    %469 = sbr.rel (0) target = $region29
  $region28: #{basic_block_forward.4} parent=0 // pred_region
    _
  $region29: #{basic_block_forward.4} parent=0 // pred_fallthru
    _
  // Predicated region
  $region30: #{basic_block_forward.4} parent=0 // pred_check
    _
  $region31: #{basic_block_forward.4} parent=0 // pred_check_branch
    %471 = sbr.rel (0) target = $region33
  $region32: #{basic_block_forward.4} parent=0 // pred_region
    _
  $region33: #{basic_block_forward.4} parent=0 // pred_fallthru
    _

// kernel: basic_block_forward.5
$region0: #{basic_block_forward.5}
  #allocation0 [shape = 'u32[]', space=smem, size = 0x4, offset = 0x4, fixed_abs, tag = 'smem constant byte address 0x4 - core index']
  #allocation1 [shape = 'u32[144,128]{1,0:T(1,128)}', space=vmem, size = 0x12000, scoped, tag = 'internal scratch']
  #allocation2 [shape = 'f32[128,128]{1,0:T(8,128)}', space=vmem, size = 0x10000, scoped, tag = 'scratch operand']
  %s0 = inlined_call_operand.vmem [shape: bf16[128,72], index: 0, kind: input, shape index: {}]
  %s1 = inlined_call_operand.vmem [shape: bf16[72,128], index: 1, kind: input, shape index: {}]
  %s2 = inlined_call_operand.vmem [shape: bf16[128,128], index: 2, kind: output, shape index: {0}]
  %s3 = inlined_call_operand.vmem [shape: f32[1,3,128], index: 3, kind: output, shape index: {1}]
  %4 = xla_tuple %s2, %s3
  %s5 = sld [smem:[#allocation0]]
  $region34: #{basic_block_forward.5} parent=0
    _
  %s7 = ssub.s32 1, %s5
  %s8 = scalar_select 0, %s7, %s5
  // Predicated region
  $region2: #{basic_block_forward.5} parent=0 // pred_check
    _
  $region3: #{basic_block_forward.5} parent=0 // pred_check_branch
    %10 = sbr.rel (0) target = $region5
  $region4: #{basic_block_forward.5} parent=0 // pred_region
    _
  $region5: #{basic_block_forward.5} parent=0 // pred_fallthru
    _
  // Predicated region
  $region6: #{basic_block_forward.5} parent=0 // pred_check
    _
  $region7: #{basic_block_forward.5} parent=0 // pred_check_branch
    %12 = sbr.rel (0) target = $region9
  $region8: #{basic_block_forward.5} parent=0 // pred_region
    _
  $region9: #{basic_block_forward.5} parent=0 // pred_fallthru
    _
  %p14 = scmp.eq.s32.totalorder 0, 0
  // Predicated region
  $region10: #{basic_block_forward.5} parent=0 // pred_check
    %p15 = pneg %p14
  $region11: #{basic_block_forward.5} parent=0 // pred_check_branch
    %17 = sbr.rel (%p15) target = $region13
  $region12: #{basic_block_forward.5} parent=0 // pred_region
    %18 = vst [vmem:[#allocation2] sm:$0xff] 0.0
    %19 = vst [vmem:[#allocation2 + $0x8] sm:$0xff] 0.0
    %20 = vst [vmem:[#allocation2 + $0x10] sm:$0xff] 0.0
    %21 = vst [vmem:[#allocation2 + $0x18] sm:$0xff] 0.0
    %22 = vst [vmem:[#allocation2 + $0x20] sm:$0xff] 0.0
    %23 = vst [vmem:[#allocation2 + $0x28] sm:$0xff] 0.0
    %24 = vst [vmem:[#allocation2 + $0x30] sm:$0xff] 0.0
    %25 = vst [vmem:[#allocation2 + $0x38] sm:$0xff] 0.0
    %26 = vst [vmem:[#allocation2 + $0x40] sm:$0xff] 0.0
    %27 = vst [vmem:[#allocation2 + $0x48] sm:$0xff] 0.0
    %28 = vst [vmem:[#allocation2 + $0x50] sm:$0xff] 0.0
    %29 = vst [vmem:[#allocation2 + $0x58] sm:$0xff] 0.0
    %30 = vst [vmem:[#allocation2 + $0x60] sm:$0xff] 0.0
    %31 = vst [vmem:[#allocation2 + $0x68] sm:$0xff] 0.0
    %32 = vst [vmem:[#allocation2 + $0x70] sm:$0xff] 0.0
    %33 = vst [vmem:[#allocation2 + $0x78] sm:$0xff] 0.0
  $region13: #{basic_block_forward.5} parent=0 // pred_fallthru
    _
  %v34 = vld [vmem:[#allocation2] sm:$0xff]
  %v35 = vld [vmem:[#allocation2 + $0x8] sm:$0xff]
  %v36 = vld [vmem:[#allocation2 + $0x10] sm:$0xff]
  %v37 = vld [vmem:[#allocation2 + $0x18] sm:$0xff]
  %v38 = vld [vmem:[#allocation2 + $0x20] sm:$0xff]
  %v39 = vld [vmem:[#allocation2 + $0x28] sm:$0xff]
  %v40 = vld [vmem:[#allocation2 + $0x30] sm:$0xff]
  %v41 = vld [vmem:[#allocation2 + $0x38] sm:$0xff]
  %v42 = vld [vmem:[#allocation2 + $0x40] sm:$0xff]
  %v43 = vld [vmem:[#allocation2 + $0x48] sm:$0xff]
  %v44 = vld [vmem:[#allocation2 + $0x50] sm:$0xff]
  %v45 = vld [vmem:[#allocation2 + $0x58] sm:$0xff]
  %v46 = vld [vmem:[#allocation2 + $0x60] sm:$0xff]
  %v47 = vld [vmem:[#allocation2 + $0x68] sm:$0xff]
  %v48 = vld [vmem:[#allocation2 + $0x70] sm:$0xff]
  %v49 = vld [vmem:[#allocation2 + $0x78] sm:$0xff]
  %v50 = vld [vmem:[%s0] sm:$0xf]
  %v51 = vld [vmem:[%s0 + $0x4] sm:$0xf]
  %v52 = vld [vmem:[%s0 + $0x8] sm:$0xf]
  %v53 = vld [vmem:[%s0 + $0xc] sm:$0xf]
  %v54 = vld [vmem:[%s0 + $0x10] sm:$0xf]
  %v55 = vld [vmem:[%s0 + $0x14] sm:$0xf]
  %v56 = vld [vmem:[%s0 + $0x18] sm:$0xf]
  %v57 = vld [vmem:[%s0 + $0x1c] sm:$0xf]
  %v58 = vld [vmem:[%s0 + $0x20] sm:$0xf]
  %v59 = vld [vmem:[%s0 + $0x24] sm:$0xf]
  %v60 = vld [vmem:[%s0 + $0x28] sm:$0xf]
  %v61 = vld [vmem:[%s0 + $0x2c] sm:$0xf]
  %v62 = vld [vmem:[%s0 + $0x30] sm:$0xf]
  %v63 = vld [vmem:[%s0 + $0x34] sm:$0xf]
  %v64 = vld [vmem:[%s0 + $0x38] sm:$0xf]
  %v65 = vld [vmem:[%s0 + $0x3c] sm:$0xf]
  %v66 = vld [vmem:[%s1] sm:$0xf]
  %v67 = vld [vmem:[%s1 + $0x4] sm:$0xf]
  %v68 = vld [vmem:[%s1 + $0x8] sm:$0xf]
  %v69 = vld [vmem:[%s1 + $0xc] sm:$0xf]
  %v70 = vld [vmem:[%s1 + $0x10] sm:$0xf]
  %v71 = vld [vmem:[%s1 + $0x14] sm:$0xf]
  %v72 = vld [vmem:[%s1 + $0x18] sm:$0xf]
  %v73 = vld [vmem:[%s1 + $0x1c] sm:$0xf]
  %v74 = vld [vmem:[%s1 + $0x20] sm:$0xf]
  %v91 = vunpack.c.l.b16 %v50
  %v92 = vunpack.c.l.b16 %v51
  %v93 = vunpack.c.l.b16 %v52
  %v94 = vunpack.c.l.b16 %v53
  %v95 = vunpack.c.l.b16 %v54
  %v96 = vunpack.c.l.b16 %v55
  %v97 = vunpack.c.l.b16 %v56
  %v98 = vunpack.c.l.b16 %v57
  %v99 = vunpack.c.l.b16 %v58
  %v100 = vunpack.c.l.b16 %v59
  %v101 = vunpack.c.l.b16 %v60
  %v102 = vunpack.c.l.b16 %v61
  %v103 = vunpack.c.l.b16 %v62
  %v104 = vunpack.c.l.b16 %v63
  %v105 = vunpack.c.l.b16 %v64
  %v106 = vunpack.c.l.b16 %v65
  %v107 = vpack.c.b16 %v92, %v91
  %v108 = vpack.c.b16 %v94, %v93
  %v109 = vpack.c.b16 %v96, %v95
  %v110 = vpack.c.b16 %v98, %v97
  %v111 = vpack.c.b16 %v100, %v99
  %v112 = vpack.c.b16 %v102, %v101
  %v113 = vpack.c.b16 %v104, %v103
  %v114 = vpack.c.b16 %v106, %v105
  %v124 = vunpack.c.l.b16 %v66
  %v125 = vunpack.c.l.b16 %v67
  %v126 = vunpack.c.l.b16 %v68
  %v127 = vunpack.c.l.b16 %v69
  %v128 = vunpack.c.l.b16 %v70
  %v129 = vunpack.c.l.b16 %v71
  %v130 = vunpack.c.l.b16 %v72
  %v131 = vunpack.c.l.b16 %v73
  %v132 = vunpack.c.l.b16 %v74
  %v133 = vpack.c.b16 %v125, %v124
  %v134 = vpack.c.b16 %v127, %v126
  %v135 = vpack.c.b16 %v129, %v128
  %v136 = vpack.c.b16 %v131, %v130
  %v137 = vpack.c.b16 %v132, %v132
  %vm142 = vcmask 588800
  %v144 = vsel %vm142, %v107, 0
  %v147 = vsel %vm142, %v108, 0
  %v150 = vsel %vm142, %v109, 0
  %v153 = vsel %vm142, %v110, 0
  %v156 = vsel %vm142, %v111, 0
  %v159 = vsel %vm142, %v112, 0
  %v162 = vsel %vm142, %v113, 0
  %v165 = vsel %vm142, %v114, 0
  %vm167 = vcmask 1043456
  %v169 = vsel %vm167, %v137, 0
  %171 = vmatprep.subr.bf16.mxu0 0
  %172 = vmatpush1.bf16.msra.mxu0 %v133
  %173 = vmatprep.subr.bf16.mxu0 0
  %174 = vmatpush1.bf16.msra.mxu0 %v134
  %175 = vmatprep.subr.bf16.mxu0 0
  %176 = vmatpush1.bf16.msra.mxu0 %v135
  %177 = vmatprep.subr.bf16.mxu0 0
  %178 = vmatpush1.bf16.msra.mxu0 %v136
  %179 = vmatprep.subr.bf16.mxu0 0
  %180 = vmatpush1.bf16.msra.mxu0 %v169
  %181 = vmatprep.subr.bf16.mxu0 0
  %182 = vmatpush1.bf16.msra.mxu0 0
  %183 = vmatprep.subr.bf16.mxu0 0
  %184 = vmatpush1.bf16.msra.mxu0 0
  %185 = vmatprep.subr.bf16.mxu0 0
  %186 = vmatpush1.bf16.msra.mxu0 0
  %187 = vmatprep.subr.bf16.mxu0 0
  %188 = vmatpush1.bf16.msra.mxu0 0
  %189 = vmatprep.subr.bf16.mxu0 0
  %190 = vmatpush1.bf16.msra.mxu0 0
  %191 = vmatprep.subr.bf16.mxu0 0
  %192 = vmatpush1.bf16.msra.mxu0 0
  %193 = vmatprep.subr.bf16.mxu0 0
  %194 = vmatpush1.bf16.msra.mxu0 0
  %195 = vmatprep.subr.bf16.mxu0 0
  %196 = vmatpush1.bf16.msra.mxu0 0
  %197 = vmatprep.subr.bf16.mxu0 0
  %198 = vmatpush1.bf16.msra.mxu0 0
  %199 = vmatprep.subr.bf16.mxu0 0
  %200 = vmatpush1.bf16.msra.mxu0 0
  %201 = vmatprep.subr.bf16.mxu0 0
  %202 = vmatpush1.bf16.msra.mxu0 0
  %203 = vmatprep.mubr.bf16.mxu0 0
  %204 = vmatmul.mubr.bf16.gmra.mrb[0].mxu0 %v144
  %v205 = vpop.f32.mrb[0].mxu0
  %v206 = vadd.f32 0.0, %v205
  %v207 = vpop.f32.mrb[0].mxu0
  %v208 = vpop.f32.mrb[0].mxu0
  %v209 = vadd.f32 0.0, %v208
  %v210 = vpop.f32.mrb[0].mxu0
  %211 = vmatprep.mubr.bf16.mxu0 0
  %212 = vmatmul.mubr.bf16.gmra.mrb[0].mxu0 %v147
  %v213 = vpop.f32.mrb[0].mxu0
  %v214 = vadd.f32 0.0, %v213
  %v215 = vpop.f32.mrb[0].mxu0
  %v216 = vpop.f32.mrb[0].mxu0
  %v217 = vadd.f32 0.0, %v216
  %v218 = vpop.f32.mrb[0].mxu0
  %219 = vmatprep.mubr.bf16.mxu0 0
  %220 = vmatmul.mubr.bf16.gmra.mrb[0].mxu0 %v150
  %v221 = vpop.f32.mrb[0].mxu0
  %v222 = vadd.f32 0.0, %v221
  %v223 = vpop.f32.mrb[0].mxu0
  %v224 = vpop.f32.mrb[0].mxu0
  %v225 = vadd.f32 0.0, %v224
  %v226 = vpop.f32.mrb[0].mxu0
  %227 = vmatprep.mubr.bf16.mxu0 0
  %228 = vmatmul.mubr.bf16.gmra.mrb[0].mxu0 %v153
  %v229 = vpop.f32.mrb[0].mxu0
  %v230 = vadd.f32 0.0, %v229
  %v231 = vpop.f32.mrb[0].mxu0
  %v232 = vpop.f32.mrb[0].mxu0
  %v233 = vadd.f32 0.0, %v232
  %v234 = vpop.f32.mrb[0].mxu0
  %235 = vmatprep.mubr.bf16.mxu0 0
  %236 = vmatmul.mubr.bf16.gmra.mrb[0].mxu0 %v156
  %v237 = vpop.f32.mrb[0].mxu0
  %v238 = vadd.f32 0.0, %v237
  %v239 = vpop.f32.mrb[0].mxu0
  %v240 = vpop.f32.mrb[0].mxu0
  %v241 = vadd.f32 0.0, %v240
  %v242 = vpop.f32.mrb[0].mxu0
  %243 = vmatprep.mubr.bf16.mxu0 0
  %244 = vmatmul.mubr.bf16.gmra.mrb[0].mxu0 %v159
  %v245 = vpop.f32.mrb[0].mxu0
  %v246 = vadd.f32 0.0, %v245
  %v247 = vpop.f32.mrb[0].mxu0
  %v248 = vpop.f32.mrb[0].mxu0
  %v249 = vadd.f32 0.0, %v248
  %v250 = vpop.f32.mrb[0].mxu0
  %251 = vmatprep.mubr.bf16.mxu0 0
  %252 = vmatmul.mubr.bf16.gmra.mrb[0].mxu0 %v162
  %v253 = vpop.f32.mrb[0].mxu0
  %v254 = vadd.f32 0.0, %v253
  %v255 = vpop.f32.mrb[0].mxu0
  %v256 = vpop.f32.mrb[0].mxu0
  %v257 = vadd.f32 0.0, %v256
  %v258 = vpop.f32.mrb[0].mxu0
  %259 = vmatprep.mubr.bf16.mxu0 0
  %260 = vmatmul.mubr.bf16.gmra.mrb[0].mxu0 %v165
  %v261 = vpop.f32.mrb[0].mxu0
  %v262 = vadd.f32 0.0, %v261
  %v263 = vpop.f32.mrb[0].mxu0
  %v264 = vpop.f32.mrb[0].mxu0
  %v265 = vadd.f32 0.0, %v264
  %v266 = vpop.f32.mrb[0].mxu0
  %267 = vdwg.mxu0
  %v268 = vadd.f32 %v34, %v206
  %v269 = vadd.f32 %v35, %v209
  %v270 = vadd.f32 %v36, %v214
  %v271 = vadd.f32 %v37, %v217
  %v272 = vadd.f32 %v38, %v222
  %v273 = vadd.f32 %v39, %v225
  %v274 = vadd.f32 %v40, %v230
  %v275 = vadd.f32 %v41, %v233
  %v276 = vadd.f32 %v42, %v238
  %v277 = vadd.f32 %v43, %v241
  %v278 = vadd.f32 %v44, %v246
  %v279 = vadd.f32 %v45, %v249
  %v280 = vadd.f32 %v46, %v254
  %v281 = vadd.f32 %v47, %v257
  %v282 = vadd.f32 %v48, %v262
  %v283 = vadd.f32 %v49, %v265
  %284 = vst [vmem:[#allocation2] sm:$0xff] %v268
  %285 = vst [vmem:[#allocation2 + $0x8] sm:$0xff] %v269
  %286 = vst [vmem:[#allocation2 + $0x10] sm:$0xff] %v270
  %287 = vst [vmem:[#allocation2 + $0x18] sm:$0xff] %v271
  %288 = vst [vmem:[#allocation2 + $0x20] sm:$0xff] %v272
  %289 = vst [vmem:[#allocation2 + $0x28] sm:$0xff] %v273
  %290 = vst [vmem:[#allocation2 + $0x30] sm:$0xff] %v274
  %291 = vst [vmem:[#allocation2 + $0x38] sm:$0xff] %v275
  %292 = vst [vmem:[#allocation2 + $0x40] sm:$0xff] %v276
  %293 = vst [vmem:[#allocation2 + $0x48] sm:$0xff] %v277
  %294 = vst [vmem:[#allocation2 + $0x50] sm:$0xff] %v278
  %295 = vst [vmem:[#allocation2 + $0x58] sm:$0xff] %v279
  %296 = vst [vmem:[#allocation2 + $0x60] sm:$0xff] %v280
  %297 = vst [vmem:[#allocation2 + $0x68] sm:$0xff] %v281
  %298 = vst [vmem:[#allocation2 + $0x70] sm:$0xff] %v282
  %299 = vst [vmem:[#allocation2 + $0x78] sm:$0xff] %v283
  // Predicated region
  $region14: #{basic_block_forward.5} parent=0 // pred_check
    %p300 = pneg %p14
  $region15: #{basic_block_forward.5} parent=0 // pred_check_branch
    %302 = sbr.rel (%p300) target = $region17
  $region16: #{basic_block_forward.5} parent=0 // pred_region
    %v303 = vld [vmem:[#allocation2] sm:$0xff]
    %v304 = vld [vmem:[#allocation2 + $0x8] sm:$0xff]
    %v305 = vld [vmem:[#allocation2 + $0x10] sm:$0xff]
    %v306 = vld [vmem:[#allocation2 + $0x18] sm:$0xff]
    %v307 = vld [vmem:[#allocation2 + $0x20] sm:$0xff]
    %v308 = vld [vmem:[#allocation2 + $0x28] sm:$0xff]
    %v309 = vld [vmem:[#allocation2 + $0x30] sm:$0xff]
    %v310 = vld [vmem:[#allocation2 + $0x38] sm:$0xff]
    %v311 = vld [vmem:[#allocation2 + $0x40] sm:$0xff]
    %v312 = vld [vmem:[#allocation2 + $0x48] sm:$0xff]
    %v313 = vld [vmem:[#allocation2 + $0x50] sm:$0xff]
    %v314 = vld [vmem:[#allocation2 + $0x58] sm:$0xff]
    %v315 = vld [vmem:[#allocation2 + $0x60] sm:$0xff]
    %v316 = vld [vmem:[#allocation2 + $0x68] sm:$0xff]
    %v317 = vld [vmem:[#allocation2 + $0x70] sm:$0xff]
    %v318 = vld [vmem:[#allocation2 + $0x78] sm:$0xff]
    %v319 = vpack.c.bf16 %v304, %v303
    %v320 = vpack.c.bf16 %v306, %v305
    %v321 = vpack.c.bf16 %v308, %v307
    %v322 = vpack.c.bf16 %v310, %v309
    %v323 = vpack.c.bf16 %v312, %v311
    %v324 = vpack.c.bf16 %v314, %v313
    %v325 = vpack.c.bf16 %v316, %v315
    %v326 = vpack.c.bf16 %v318, %v317
    %v335 = vunpack.c.l.b16 %v319
    %v336 = vunpack.c.h.b16 %v319
    %v337 = vunpack.c.l.b16 %v320
    %v338 = vunpack.c.h.b16 %v320
    %v339 = vunpack.c.l.b16 %v321
    %v340 = vunpack.c.h.b16 %v321
    %v341 = vunpack.c.l.b16 %v322
    %v342 = vunpack.c.h.b16 %v322
    %v343 = vunpack.c.l.b16 %v323
    %v344 = vunpack.c.h.b16 %v323
    %v345 = vunpack.c.l.b16 %v324
    %v346 = vunpack.c.h.b16 %v324
    %v347 = vunpack.c.l.b16 %v325
    %v348 = vunpack.c.h.b16 %v325
    %v349 = vunpack.c.l.b16 %v326
    %v350 = vunpack.c.h.b16 %v326
    %v351 = vpack.c.b16 %v335, %v335
    %v352 = vpack.c.b16 %v336, %v336
    %v353 = vpack.c.b16 %v337, %v337
    %v354 = vpack.c.b16 %v338, %v338
    %v355 = vpack.c.b16 %v339, %v339
    %v356 = vpack.c.b16 %v340, %v340
    %v357 = vpack.c.b16 %v341, %v341
    %v358 = vpack.c.b16 %v342, %v342
    %v359 = vpack.c.b16 %v343, %v343
    %v360 = vpack.c.b16 %v344, %v344
    %v361 = vpack.c.b16 %v345, %v345
    %v362 = vpack.c.b16 %v346, %v346
    %v363 = vpack.c.b16 %v347, %v347
    %v364 = vpack.c.b16 %v348, %v348
    %v365 = vpack.c.b16 %v349, %v349
    %v366 = vpack.c.b16 %v350, %v350
    %383 = vst [vmem:[%s2] sm:$0xf] %v351
    %384 = vst [vmem:[%s2 + $0x4] sm:$0xf] %v352
    %385 = vst [vmem:[%s2 + $0x8] sm:$0xf] %v353
    %386 = vst [vmem:[%s2 + $0xc] sm:$0xf] %v354
    %387 = vst [vmem:[%s2 + $0x10] sm:$0xf] %v355
    %388 = vst [vmem:[%s2 + $0x14] sm:$0xf] %v356
    %389 = vst [vmem:[%s2 + $0x18] sm:$0xf] %v357
    %390 = vst [vmem:[%s2 + $0x1c] sm:$0xf] %v358
    %391 = vst [vmem:[%s2 + $0x20] sm:$0xf] %v359
    %392 = vst [vmem:[%s2 + $0x24] sm:$0xf] %v360
    %393 = vst [vmem:[%s2 + $0x28] sm:$0xf] %v361
    %394 = vst [vmem:[%s2 + $0x2c] sm:$0xf] %v362
    %395 = vst [vmem:[%s2 + $0x30] sm:$0xf] %v363
    %396 = vst [vmem:[%s2 + $0x34] sm:$0xf] %v364
    %397 = vst [vmem:[%s2 + $0x38] sm:$0xf] %v365
    %398 = vst [vmem:[%s2 + $0x3c] sm:$0xf] %v366
    %v399 = vlaneseq
    %v400 = vshrl.u32 %v399, 7
    %v401 = vsub.s32 0, %v400
    %v402 = vrot.slane %v303, %v401
    %v403 = vsub.f32 %v303, %v402
    %v404 = vsub.f32 %v304, %v402
    %v405 = vsub.f32 %v305, %v402
    %v406 = vsub.f32 %v306, %v402
    %v407 = vsub.f32 %v307, %v402
    %v408 = vsub.f32 %v308, %v402
    %v409 = vsub.f32 %v309, %v402
    %v410 = vsub.f32 %v310, %v402
    %v411 = vsub.f32 %v311, %v402
    %v412 = vsub.f32 %v312, %v402
    %v413 = vsub.f32 %v313, %v402
    %v414 = vsub.f32 %v314, %v402
    %v415 = vsub.f32 %v315, %v402
    %v416 = vsub.f32 %v316, %v402
    %v417 = vsub.f32 %v317, %v402
    %v418 = vsub.f32 %v318, %v402
    %v419 = vadd.f32 %v403, %v404
    %v420 = vadd.f32 %v419, %v405
    %v421 = vadd.f32 %v420, %v406
    %v422 = vadd.f32 %v421, %v407
    %v423 = vadd.f32 %v422, %v408
    %v424 = vadd.f32 %v423, %v409
    %v425 = vadd.f32 %v424, %v410
    %v426 = vadd.f32 %v425, %v411
    %v427 = vadd.f32 %v426, %v412
    %v428 = vadd.f32 %v427, %v413
    %v429 = vadd.f32 %v428, %v414
    %v430 = vadd.f32 %v429, %v415
    %v431 = vadd.f32 %v430, %v416
    %v432 = vadd.f32 %v431, %v417
    %v433 = vadd.f32 %v432, %v418
    %v434 = vrot.slane %v433, 4
    %v435 = vadd.f32 %v433, %v434
    %v436 = vrot.slane %v435, 2
    %v437 = vadd.f32 %v435, %v436
    %v438 = vrot.slane %v437, 1
    %v439 = vadd.f32 %v437, %v438
    %440 = vst [vmem:[%s3] sm:$0x1] %v439
    %v441 = vmul.f32 %v403, %v403
    %v442 = vmul.f32 %v404, %v404
    %v443 = vmul.f32 %v405, %v405
    %v444 = vmul.f32 %v406, %v406
    %v445 = vmul.f32 %v407, %v407
    %v446 = vmul.f32 %v408, %v408
    %v447 = vmul.f32 %v409, %v409
    %v448 = vmul.f32 %v410, %v410
    %v449 = vmul.f32 %v411, %v411
    %v450 = vmul.f32 %v412, %v412
    %v451 = vmul.f32 %v413, %v413
    %v452 = vmul.f32 %v414, %v414
    %v453 = vmul.f32 %v415, %v415
    %v454 = vmul.f32 %v416, %v416
    %v455 = vmul.f32 %v417, %v417
    %v456 = vmul.f32 %v418, %v418
    %v457 = vadd.f32 %v441, %v442
    %v458 = vadd.f32 %v457, %v443
    %v459 = vadd.f32 %v458, %v444
    %v460 = vadd.f32 %v459, %v445
    %v461 = vadd.f32 %v460, %v446
    %v462 = vadd.f32 %v461, %v447
    %v463 = vadd.f32 %v462, %v448
    %v464 = vadd.f32 %v463, %v449
    %v465 = vadd.f32 %v464, %v450
    %v466 = vadd.f32 %v465, %v451
    %v467 = vadd.f32 %v466, %v452
    %v468 = vadd.f32 %v467, %v453
    %v469 = vadd.f32 %v468, %v454
    %v470 = vadd.f32 %v469, %v455
    %v471 = vadd.f32 %v470, %v456
    %v472 = vrot.slane %v471, 4
    %v473 = vadd.f32 %v471, %v472
    %v474 = vrot.slane %v473, 2
    %v475 = vadd.f32 %v473, %v474
    %v476 = vrot.slane %v475, 1
    %v477 = vadd.f32 %v475, %v476
    %478 = vst [vmem:[%s3 + $0x1] sm:$0x1] %v477
    %479 = vst [vmem:[%s3 + $0x2] sm:$0x1] %v303
  $region17: #{basic_block_forward.5} parent=0 // pred_fallthru
    _
  // Predicated region
  $region18: #{basic_block_forward.5} parent=0 // pred_check
    _
  $region19: #{basic_block_forward.5} parent=0 // pred_check_branch
    %481 = sbr.rel (0) target = $region21
  $region20: #{basic_block_forward.5} parent=0 // pred_region
    _
  $region21: #{basic_block_forward.5} parent=0 // pred_fallthru
    _
  // Predicated region
  $region22: #{basic_block_forward.5} parent=0 // pred_check
    _
  $region23: #{basic_block_forward.5} parent=0 // pred_check_branch
    %483 = sbr.rel (0) target = $region25
  $region24: #{basic_block_forward.5} parent=0 // pred_region
    _
  $region25: #{basic_block_forward.5} parent=0 // pred_fallthru
    _
  // Predicated region
  $region26: #{basic_block_forward.5} parent=0 // pred_check
    _
  $region27: #{basic_block_forward.5} parent=0 // pred_check_branch
    %485 = sbr.rel (0) target = $region29
  $region28: #{basic_block_forward.5} parent=0 // pred_region
    _
  $region29: #{basic_block_forward.5} parent=0 // pred_fallthru
    _
  // Predicated region
  $region30: #{basic_block_forward.5} parent=0 // pred_check
    _
  $region31: #{basic_block_forward.5} parent=0 // pred_check_branch
    %487 = sbr.rel (0) target = $region33
  $region32: #{basic_block_forward.5} parent=0 // pred_region
    _
  $region33: #{basic_block_forward.5} parent=0 // pred_fallthru
    _

// kernel: basic_block_forward.7
$region0: #{basic_block_forward.7}
  #allocation0 [shape = 'u32[]', space=smem, size = 0x4, offset = 0x4, fixed_abs, tag = 'smem constant byte address 0x4 - core index']
  #allocation1 [shape = 'u32[144,128]{1,0:T(1,128)}', space=vmem, size = 0x12000, scoped, tag = 'internal scratch']
  %s0 = inlined_call_operand.vmem [shape: bf16[128,128], index: 0, kind: input, shape index: {}]
  %s1 = inlined_call_operand.vmem [shape: bf16[128,128], index: 1, kind: input, shape index: {}]
  %s2 = inlined_call_operand.vmem [shape: f32[1,128], index: 2, kind: input, shape index: {}]
  %s3 = inlined_call_operand.vmem [shape: f32[1,128], index: 3, kind: input, shape index: {}]
  %s4 = inlined_call_operand.vmem [shape: f32[1,128], index: 4, kind: input, shape index: {}]
  %s5 = inlined_call_operand.vmem [shape: f32[1,128], index: 5, kind: input, shape index: {}]
  %s6 = inlined_call_operand.vmem [shape: f32[128,128], index: 6, kind: output, shape index: {}]
  %s7 = sld [smem:[#allocation0]]
  $region34: #{basic_block_forward.7} parent=0
    _
  %s9 = ssub.s32 1, %s7
  %s10 = scalar_select 0, %s9, %s7
  // Predicated region
  $region2: #{basic_block_forward.7} parent=0 // pred_check
    _
  $region3: #{basic_block_forward.7} parent=0 // pred_check_branch
    %12 = sbr.rel (0) target = $region5
  $region4: #{basic_block_forward.7} parent=0 // pred_region
    _
  $region5: #{basic_block_forward.7} parent=0 // pred_fallthru
    _
  // Predicated region
  $region6: #{basic_block_forward.7} parent=0 // pred_check
    _
  $region7: #{basic_block_forward.7} parent=0 // pred_check_branch
    %14 = sbr.rel (0) target = $region9
  $region8: #{basic_block_forward.7} parent=0 // pred_region
    _
  $region9: #{basic_block_forward.7} parent=0 // pred_fallthru
    _
  // Predicated region
  $region10: #{basic_block_forward.7} parent=0 // pred_check
    _
  $region11: #{basic_block_forward.7} parent=0 // pred_check_branch
    %16 = sbr.rel (0) target = $region13
  $region12: #{basic_block_forward.7} parent=0 // pred_region
    _
  $region13: #{basic_block_forward.7} parent=0 // pred_fallthru
    _
  // Predicated region
  $region14: #{basic_block_forward.7} parent=0 // pred_check
    _
  $region15: #{basic_block_forward.7} parent=0 // pred_check_branch
    %18 = sbr.rel (0) target = $region17
  $region16: #{basic_block_forward.7} parent=0 // pred_region
    _
  $region17: #{basic_block_forward.7} parent=0 // pred_fallthru
    _
  // Predicated region
  $region18: #{basic_block_forward.7} parent=0 // pred_check
    _
  $region19: #{basic_block_forward.7} parent=0 // pred_check_branch
    %20 = sbr.rel (0) target = $region21
  $region20: #{basic_block_forward.7} parent=0 // pred_region
    _
  $region21: #{basic_block_forward.7} parent=0 // pred_fallthru
    _
  // Predicated region
  $region22: #{basic_block_forward.7} parent=0 // pred_check
    _
  $region23: #{basic_block_forward.7} parent=0 // pred_check_branch
    %22 = sbr.rel (0) target = $region25
  $region24: #{basic_block_forward.7} parent=0 // pred_region
    _
  $region25: #{basic_block_forward.7} parent=0 // pred_fallthru
    _
  %v23 = vld [vmem:[%s0] sm:$0xf]
  %v24 = vld [vmem:[%s0 + $0x4] sm:$0xf]
  %v25 = vld [vmem:[%s0 + $0x8] sm:$0xf]
  %v26 = vld [vmem:[%s0 + $0xc] sm:$0xf]
  %v27 = vld [vmem:[%s0 + $0x10] sm:$0xf]
  %v28 = vld [vmem:[%s0 + $0x14] sm:$0xf]
  %v29 = vld [vmem:[%s0 + $0x18] sm:$0xf]
  %v30 = vld [vmem:[%s0 + $0x1c] sm:$0xf]
  %v31 = vld [vmem:[%s0 + $0x20] sm:$0xf]
  %v32 = vld [vmem:[%s0 + $0x24] sm:$0xf]
  %v33 = vld [vmem:[%s0 + $0x28] sm:$0xf]
  %v34 = vld [vmem:[%s0 + $0x2c] sm:$0xf]
  %v35 = vld [vmem:[%s0 + $0x30] sm:$0xf]
  %v36 = vld [vmem:[%s0 + $0x34] sm:$0xf]
  %v37 = vld [vmem:[%s0 + $0x38] sm:$0xf]
  %v38 = vld [vmem:[%s0 + $0x3c] sm:$0xf]
  %v39 = vunpack.c.l.bf16 %v23
  %v40 = vunpack.c.l.bf16 %v24
  %v41 = vunpack.c.l.bf16 %v25
  %v42 = vunpack.c.l.bf16 %v26
  %v43 = vunpack.c.l.bf16 %v27
  %v44 = vunpack.c.l.bf16 %v28
  %v45 = vunpack.c.l.bf16 %v29
  %v46 = vunpack.c.l.bf16 %v30
  %v47 = vunpack.c.l.bf16 %v31
  %v48 = vunpack.c.l.bf16 %v32
  %v49 = vunpack.c.l.bf16 %v33
  %v50 = vunpack.c.l.bf16 %v34
  %v51 = vunpack.c.l.bf16 %v35
  %v52 = vunpack.c.l.bf16 %v36
  %v53 = vunpack.c.l.bf16 %v37
  %v54 = vunpack.c.l.bf16 %v38
  %v55 = vld [vmem:[%s2] sm:$0x1]
  %v57 = vlaneseq
  %v58 = vshrl.u32 %v57, 7
  %v59 = vsub.s32 0, %v58
  %v60 = vrot.slane %v55, %v59
  %v62 = vmul.f32 %v39, %v60
  %v63 = vmul.f32 %v40, %v60
  %v64 = vmul.f32 %v41, %v60
  %v65 = vmul.f32 %v42, %v60
  %v66 = vmul.f32 %v43, %v60
  %v67 = vmul.f32 %v44, %v60
  %v68 = vmul.f32 %v45, %v60
  %v69 = vmul.f32 %v46, %v60
  %v70 = vmul.f32 %v47, %v60
  %v71 = vmul.f32 %v48, %v60
  %v72 = vmul.f32 %v49, %v60
  %v73 = vmul.f32 %v50, %v60
  %v74 = vmul.f32 %v51, %v60
  %v75 = vmul.f32 %v52, %v60
  %v76 = vmul.f32 %v53, %v60
  %v77 = vmul.f32 %v54, %v60
  %v78 = vld [vmem:[%s3] sm:$0x1]
  %v80 = vlaneseq
  %v81 = vshrl.u32 %v80, 7
  %v82 = vsub.s32 0, %v81
  %v83 = vrot.slane %v78, %v82
  %v85 = vadd.f32 %v62, %v83
  %v86 = vadd.f32 %v63, %v83
  %v87 = vadd.f32 %v64, %v83
  %v88 = vadd.f32 %v65, %v83
  %v89 = vadd.f32 %v66, %v83
  %v90 = vadd.f32 %v67, %v83
  %v91 = vadd.f32 %v68, %v83
  %v92 = vadd.f32 %v69, %v83
  %v93 = vadd.f32 %v70, %v83
  %v94 = vadd.f32 %v71, %v83
  %v95 = vadd.f32 %v72, %v83
  %v96 = vadd.f32 %v73, %v83
  %v97 = vadd.f32 %v74, %v83
  %v98 = vadd.f32 %v75, %v83
  %v99 = vadd.f32 %v76, %v83
  %v100 = vadd.f32 %v77, %v83
  %v101 = vld [vmem:[%s1] sm:$0xf]
  %v102 = vld [vmem:[%s1 + $0x4] sm:$0xf]
  %v103 = vld [vmem:[%s1 + $0x8] sm:$0xf]
  %v104 = vld [vmem:[%s1 + $0xc] sm:$0xf]
  %v105 = vld [vmem:[%s1 + $0x10] sm:$0xf]
  %v106 = vld [vmem:[%s1 + $0x14] sm:$0xf]
  %v107 = vld [vmem:[%s1 + $0x18] sm:$0xf]
  %v108 = vld [vmem:[%s1 + $0x1c] sm:$0xf]
  %v109 = vld [vmem:[%s1 + $0x20] sm:$0xf]
  %v110 = vld [vmem:[%s1 + $0x24] sm:$0xf]
  %v111 = vld [vmem:[%s1 + $0x28] sm:$0xf]
  %v112 = vld [vmem:[%s1 + $0x2c] sm:$0xf]
  %v113 = vld [vmem:[%s1 + $0x30] sm:$0xf]
  %v114 = vld [vmem:[%s1 + $0x34] sm:$0xf]
  %v115 = vld [vmem:[%s1 + $0x38] sm:$0xf]
  %v116 = vld [vmem:[%s1 + $0x3c] sm:$0xf]
  %v117 = vunpack.c.l.bf16 %v101
  %v118 = vunpack.c.l.bf16 %v102
  %v119 = vunpack.c.l.bf16 %v103
  %v120 = vunpack.c.l.bf16 %v104
  %v121 = vunpack.c.l.bf16 %v105
  %v122 = vunpack.c.l.bf16 %v106
  %v123 = vunpack.c.l.bf16 %v107
  %v124 = vunpack.c.l.bf16 %v108
  %v125 = vunpack.c.l.bf16 %v109
  %v126 = vunpack.c.l.bf16 %v110
  %v127 = vunpack.c.l.bf16 %v111
  %v128 = vunpack.c.l.bf16 %v112
  %v129 = vunpack.c.l.bf16 %v113
  %v130 = vunpack.c.l.bf16 %v114
  %v131 = vunpack.c.l.bf16 %v115
  %v132 = vunpack.c.l.bf16 %v116
  %v133 = vld [vmem:[%s4] sm:$0x1]
  %v135 = vlaneseq
  %v136 = vshrl.u32 %v135, 7
  %v137 = vsub.s32 0, %v136
  %v138 = vrot.slane %v133, %v137
  %v140 = vmul.f32 %v117, %v138
  %v141 = vmul.f32 %v118, %v138
  %v142 = vmul.f32 %v119, %v138
  %v143 = vmul.f32 %v120, %v138
  %v144 = vmul.f32 %v121, %v138
  %v145 = vmul.f32 %v122, %v138
  %v146 = vmul.f32 %v123, %v138
  %v147 = vmul.f32 %v124, %v138
  %v148 = vmul.f32 %v125, %v138
  %v149 = vmul.f32 %v126, %v138
  %v150 = vmul.f32 %v127, %v138
  %v151 = vmul.f32 %v128, %v138
  %v152 = vmul.f32 %v129, %v138
  %v153 = vmul.f32 %v130, %v138
  %v154 = vmul.f32 %v131, %v138
  %v155 = vmul.f32 %v132, %v138
  %v156 = vadd.f32 %v85, %v140
  %v157 = vadd.f32 %v86, %v141
  %v158 = vadd.f32 %v87, %v142
  %v159 = vadd.f32 %v88, %v143
  %v160 = vadd.f32 %v89, %v144
  %v161 = vadd.f32 %v90, %v145
  %v162 = vadd.f32 %v91, %v146
  %v163 = vadd.f32 %v92, %v147
  %v164 = vadd.f32 %v93, %v148
  %v165 = vadd.f32 %v94, %v149
  %v166 = vadd.f32 %v95, %v150
  %v167 = vadd.f32 %v96, %v151
  %v168 = vadd.f32 %v97, %v152
  %v169 = vadd.f32 %v98, %v153
  %v170 = vadd.f32 %v99, %v154
  %v171 = vadd.f32 %v100, %v155
  %v172 = vld [vmem:[%s5] sm:$0x1]
  %v174 = vlaneseq
  %v175 = vshrl.u32 %v174, 7
  %v176 = vsub.s32 0, %v175
  %v177 = vrot.slane %v172, %v176
  %v179 = vadd.f32 %v156, %v177
  %v180 = vadd.f32 %v157, %v177
  %v181 = vadd.f32 %v158, %v177
  %v182 = vadd.f32 %v159, %v177
  %v183 = vadd.f32 %v160, %v177
  %v184 = vadd.f32 %v161, %v177
  %v185 = vadd.f32 %v162, %v177
  %v186 = vadd.f32 %v163, %v177
  %v187 = vadd.f32 %v164, %v177
  %v188 = vadd.f32 %v165, %v177
  %v189 = vadd.f32 %v166, %v177
  %v190 = vadd.f32 %v167, %v177
  %v191 = vadd.f32 %v168, %v177
  %v192 = vadd.f32 %v169, %v177
  %v193 = vadd.f32 %v170, %v177
  %v194 = vadd.f32 %v171, %v177
  %v195 = vmax.f32 %v179, 0.0
  %v196 = vmax.f32 %v180, 0.0
  %v197 = vmax.f32 %v181, 0.0
  %v198 = vmax.f32 %v182, 0.0
  %v199 = vmax.f32 %v183, 0.0
  %v200 = vmax.f32 %v184, 0.0
  %v201 = vmax.f32 %v185, 0.0
  %v202 = vmax.f32 %v186, 0.0
  %v203 = vmax.f32 %v187, 0.0
  %v204 = vmax.f32 %v188, 0.0
  %v205 = vmax.f32 %v189, 0.0
  %v206 = vmax.f32 %v190, 0.0
  %v207 = vmax.f32 %v191, 0.0
  %v208 = vmax.f32 %v192, 0.0
  %v209 = vmax.f32 %v193, 0.0
  %v210 = vmax.f32 %v194, 0.0
  %211 = vst [vmem:[%s6] sm:$0xff] %v195
  %212 = vst [vmem:[%s6 + $0x8] sm:$0xff] %v196
  %213 = vst [vmem:[%s6 + $0x10] sm:$0xff] %v197
  %214 = vst [vmem:[%s6 + $0x18] sm:$0xff] %v198
  %215 = vst [vmem:[%s6 + $0x20] sm:$0xff] %v199
  %216 = vst [vmem:[%s6 + $0x28] sm:$0xff] %v200
  %217 = vst [vmem:[%s6 + $0x30] sm:$0xff] %v201
  %218 = vst [vmem:[%s6 + $0x38] sm:$0xff] %v202
  %219 = vst [vmem:[%s6 + $0x40] sm:$0xff] %v203
  %220 = vst [vmem:[%s6 + $0x48] sm:$0xff] %v204
  %221 = vst [vmem:[%s6 + $0x50] sm:$0xff] %v205
  %222 = vst [vmem:[%s6 + $0x58] sm:$0xff] %v206
  %223 = vst [vmem:[%s6 + $0x60] sm:$0xff] %v207
  %224 = vst [vmem:[%s6 + $0x68] sm:$0xff] %v208
  %225 = vst [vmem:[%s6 + $0x70] sm:$0xff] %v209
  %226 = vst [vmem:[%s6 + $0x78] sm:$0xff] %v210
  // Predicated region
  $region26: #{basic_block_forward.7} parent=0 // pred_check
    _
  $region27: #{basic_block_forward.7} parent=0 // pred_check_branch
    %228 = sbr.rel (0) target = $region29
  $region28: #{basic_block_forward.7} parent=0 // pred_region
    _
  $region29: #{basic_block_forward.7} parent=0 // pred_fallthru
    _
  // Predicated region
  $region30: #{basic_block_forward.7} parent=0 // pred_check
    _
  $region31: #{basic_block_forward.7} parent=0 // pred_check_branch
    %230 = sbr.rel (0) target = $region33
  $region32: #{basic_block_forward.7} parent=0 // pred_region
    _
  $region33: #{basic_block_forward.7} parent=0 // pred_fallthru
    _

</llo_original>
